<compile_context>
chip_gen: v5e
topology: v5e:2x2
jax: 0.10.0
libtpu: 0.0.40
codegen_flags: <defaults>
</compile_context>

<pallas_src>
import math

import jax
import jax.numpy as jnp
from jax.experimental import pallas as pl
from jax.experimental.pallas import tpu as pltpu

HID = 400          # hidden width of the PyTorch model
OUT_PAD = 128      # lane-dense padding of the final (N=1) layer
TILE_B = 1024      # batch tile (multiple of 8), sized for v7x's 64 MiB VMEM


def _round_up(n, m):
    return ((n + m - 1) // m) * m


def _mlp_kernel(x_ref, w1_ref, b1_ref, w2_ref, b2_ref,
                w3_ref, b3_ref, w4_ref, b4_ref, o_ref):
    # ---- layer 1: K=2 -> VPU broadcast FMAs (skip the pathological MXU shape)
    x = x_ref[...]                                                  # (tb, 2) f32
    h = (x[:, 0:1] * w1_ref[0:1, :]
         + x[:, 1:2] * w1_ref[1:2, :]
         + b1_ref[...])                                             # (tb, 400) f32
    h = jnp.maximum(h, 0.0)

    # ---- layer 2: bf16 MXU matmul, f32 accumulate
    h = jnp.dot(h.astype(jnp.bfloat16), w2_ref[...],
                preferred_element_type=jnp.float32) + b2_ref[...]
    h = jnp.maximum(h, 0.0)

    # ---- layer 3
    h = jnp.dot(h.astype(jnp.bfloat16), w3_ref[...],
                preferred_element_type=jnp.float32) + b3_ref[...]
    h = jnp.maximum(h, 0.0)

    # ---- layer 4 (padded to 128 output lanes) + sigmoid in f32
    z = jnp.dot(h.astype(jnp.bfloat16), w4_ref[...],
                preferred_element_type=jnp.float32) + b4_ref[...]   # (tb, 128) f32
    o_ref[...] = jax.nn.sigmoid(z)


def classifier_forward(x, params, tile_b=TILE_B):
    """x: any shape reshapable to (-1, 2), matching PyTorch's x.view(-1, 2).

    params: (w1, b1, w2, b2, w3, b3, w4, b4) with weights stored as
            (in_features, out_features) and biases as (1, out_features), f32.
    Returns sigmoid activations of shape (B, 1), f32.
    """
    x2d = jnp.reshape(x, (-1, 2)).astype(jnp.float32)
    B = x2d.shape[0]
    w1, b1, w2, b2, w3, b3, w4, b4 = params

    # batch tiling: pad B up to a multiple of the tile (tile is a multiple of 8)
    tb = min(tile_b, _round_up(B, 8))
    B_pad = _round_up(B, tb)
    if B_pad != B:
        x2d = jnp.pad(x2d, ((0, B_pad - B), (0, 0)))
    n_tiles = B_pad // tb

    # parameter prep: bf16 weights for the MXU layers, lane-dense final layer
    w1f = w1.astype(jnp.float32)                      # (2, 400)   f32 (VPU layer)
    b1f = b1.astype(jnp.float32)                      # (1, 400)
    w2b = w2.astype(jnp.bfloat16)                     # (400, 400) bf16
    w3b = w3.astype(jnp.bfloat16)
    b2f = b2.astype(jnp.float32)
    b3f = b3.astype(jnp.float32)
    w4p = jnp.zeros((HID, OUT_PAD), jnp.bfloat16).at[:, :1].set(w4.astype(jnp.bfloat16))
    b4p = jnp.zeros((1, OUT_PAD), jnp.float32).at[:, :1].set(b4.astype(jnp.float32))

    const = lambda i: (0, 0)   # weights/biases: resident, never re-fetched
    in_specs = [
        pl.BlockSpec((tb, 2), lambda i: (i, 0)),          # x tile
        pl.BlockSpec((2, HID), const),                    # w1
        pl.BlockSpec((1, HID), const),                    # b1
        pl.BlockSpec((HID, HID), const),                  # w2
        pl.BlockSpec((1, HID), const),                    # b2
        pl.BlockSpec((HID, HID), const),                  # w3
        pl.BlockSpec((1, HID), const),                    # b3
        pl.BlockSpec((HID, OUT_PAD), const),              # w4 (padded)
        pl.BlockSpec((1, OUT_PAD), const),                # b4 (padded)
    ]
    out_spec = pl.BlockSpec((tb, OUT_PAD), lambda i: (i, 0))

    # advisory cost hint for the XLA scheduler
    flops = 2 * B_pad * (2 * HID + 2 * HID * HID + HID * OUT_PAD)
    bytes_accessed = (B_pad * 2 * 4 + B_pad * OUT_PAD * 4
                      + 2 * HID * HID * 2 + HID * OUT_PAD * 2
                      + (2 * HID + 3 * HID + OUT_PAD) * 4)
    cost = pl.CostEstimate(flops=flops, transcendentals=B_pad * OUT_PAD,
                           bytes_accessed=bytes_accessed)

    out = pl.pallas_call(
        _mlp_kernel,
        out_shape=jax.ShapeDtypeStruct((B_pad, OUT_PAD), jnp.float32),
        grid=(n_tiles,),
        in_specs=in_specs,
        out_specs=out_spec,
        compiler_params=pltpu.CompilerParams(
            dimension_semantics=("parallel",)),
        cost_estimate=cost,
    )(x2d, w1f, b1f, w2b, b2f, w3b, b3f, w4p, b4p)

    return out[:B, 0:1]


def init_params(key):
    """Deterministic init mimicking torch.nn.Linear (uniform ±1/sqrt(fan_in)).
    Weights stored as (in_features, out_features); biases as (1, out_features)."""
    dims = [(2, HID), (HID, HID), (HID, HID), (HID, 1)]
    params = []
    for i, (fan_in, fan_out) in enumerate(dims):
        kw, kb = jax.random.split(jax.random.fold_in(key, i))
        bound = 1.0 / math.sqrt(fan_in)
        w = jax.random.uniform(kw, (fan_in, fan_out), jnp.float32, -bound, bound)
        b = jax.random.uniform(kb, (1, fan_out), jnp.float32, -bound, bound)
        params += [w, b]
    return tuple(params)


def _reference_forward(x, params):
    """Pure-JAX f32 reference matching the PyTorch module."""
    x2d = jnp.reshape(x, (-1, 2)).astype(jnp.float32)
    w1, b1, w2, b2, w3, b3, w4, b4 = params
    h = jnp.maximum(x2d @ w1 + b1, 0.0)
    h = jnp.maximum(h @ w2 + b2, 0.0)
    h = jnp.maximum(h @ w3 + b3, 0.0)
    return jax.nn.sigmoid(h @ w4 + b4)


if __name__ == "__main__":
    key = jax.random.PRNGKey(0)
    pkey, xkey = jax.random.split(key)
    params = init_params(pkey)

    # small input; forward does x.view(-1, 2) -> batch of 8 points in R^2
    x = jax.random.normal(xkey, (8, 2), jnp.float32)

    y = classifier_forward(x, params)
    jax.block_until_ready(y)

    assert y.shape == (8, 1) and y.dtype == jnp.float32
    assert bool(jnp.all((y >= 0.0) & (y <= 1.0)))

    # correctness vs f32 reference (bf16 matmuls with f32 accumulate -> loose tol)
    y_ref = _reference_forward(x, params)
    assert bool(jnp.all(jnp.abs(y - y_ref) < 2e-2)), "mismatch vs reference"

    print("KERNEL_OK")
</pallas_src>

<mosaic_0001>
module attributes {stable_mosaic.version = 11 : i64} {
  func.func @_mlp_kernel(%arg0: i32, %arg1: memref<8x2xf32, #tpu.memory_space<vmem>>, %arg2: memref<2x400xf32, #tpu.memory_space<vmem>>, %arg3: memref<1x400xf32, #tpu.memory_space<vmem>>, %arg4: memref<400x400xbf16, #tpu.memory_space<vmem>>, %arg5: memref<1x400xf32, #tpu.memory_space<vmem>>, %arg6: memref<400x400xbf16, #tpu.memory_space<vmem>>, %arg7: memref<1x400xf32, #tpu.memory_space<vmem>>, %arg8: memref<400x128xbf16, #tpu.memory_space<vmem>>, %arg9: memref<1x128xf32, #tpu.memory_space<vmem>>, %arg10: memref<8x128xf32, #tpu.memory_space<vmem>>) attributes {dimension_semantics = [#tpu.dimension_semantics<parallel>], iteration_bounds = array<i64: 1>, scalar_prefetch = 0 : i64, scratch_operands = 0 : i64, tpu.core_type = #tpu.core_type<tc>, window_params = [{transform_indices = @transform_0, window_bounds = array<i64: 8, 2>}, {pipeline_mode = #tpu.pipeline_mode<synchronous>, transform_indices = @transform_1, window_bounds = array<i64: 2, 400>}, {pipeline_mode = #tpu.pipeline_mode<synchronous>, transform_indices = @transform_2, window_bounds = array<i64: 1, 400>}, {pipeline_mode = #tpu.pipeline_mode<synchronous>, transform_indices = @transform_3, window_bounds = array<i64: 400, 400>}, {pipeline_mode = #tpu.pipeline_mode<synchronous>, transform_indices = @transform_4, window_bounds = array<i64: 1, 400>}, {pipeline_mode = #tpu.pipeline_mode<synchronous>, transform_indices = @transform_5, window_bounds = array<i64: 400, 400>}, {pipeline_mode = #tpu.pipeline_mode<synchronous>, transform_indices = @transform_6, window_bounds = array<i64: 1, 400>}, {pipeline_mode = #tpu.pipeline_mode<synchronous>, transform_indices = @transform_7, window_bounds = array<i64: 400, 128>}, {pipeline_mode = #tpu.pipeline_mode<synchronous>, transform_indices = @transform_8, window_bounds = array<i64: 1, 128>}, {transform_indices = @transform_9, window_bounds = array<i64: 8, 128>}]} {
    %c0 = arith.constant 0 : index
    %c0_0 = arith.constant 0 : index
    %0 = vector.load %arg1[%c0, %c0_0] : memref<8x2xf32, #tpu.memory_space<vmem>>, vector<8x2xf32>
    %1 = vector.extract_strided_slice %0 {offsets = [0, 0], sizes = [8, 1], strides = [1, 1]} : vector<8x2xf32> to vector<8x1xf32>
    %c0_1 = arith.constant 0 : index
    %c0_2 = arith.constant 0 : index
    %2 = vector.load %arg2[%c0_1, %c0_2] : memref<2x400xf32, #tpu.memory_space<vmem>>, vector<1x400xf32>
    %3 = vector.broadcast %1 : vector<8x1xf32> to vector<8x400xf32>
    %4 = vector.broadcast %2 : vector<1x400xf32> to vector<8x400xf32>
    %5 = arith.mulf %3, %4 : vector<8x400xf32>
    %6 = vector.extract_strided_slice %0 {offsets = [0, 1], sizes = [8, 1], strides = [1, 1]} : vector<8x2xf32> to vector<8x1xf32>
    %c1 = arith.constant 1 : index
    %c0_3 = arith.constant 0 : index
    %7 = vector.load %arg2[%c1, %c0_3] : memref<2x400xf32, #tpu.memory_space<vmem>>, vector<1x400xf32>
    %8 = vector.broadcast %6 : vector<8x1xf32> to vector<8x400xf32>
    %9 = vector.broadcast %7 : vector<1x400xf32> to vector<8x400xf32>
    %10 = arith.mulf %8, %9 : vector<8x400xf32>
    %11 = arith.addf %5, %10 : vector<8x400xf32>
    %c0_4 = arith.constant 0 : index
    %c0_5 = arith.constant 0 : index
    %12 = vector.load %arg3[%c0_4, %c0_5] : memref<1x400xf32, #tpu.memory_space<vmem>>, vector<1x400xf32>
    %13 = vector.broadcast %12 : vector<1x400xf32> to vector<8x400xf32>
    %14 = arith.addf %11, %13 : vector<8x400xf32>
    %cst = arith.constant 0.000000e+00 : f32
    %15 = vector.broadcast %cst : f32 to vector<8x400xf32>
    %16 = arith.maximumf %14, %15 : vector<8x400xf32>
    %17 = arith.truncf %16 : vector<8x400xf32> to vector<8x400xbf16>
    %c0_6 = arith.constant 0 : index
    %c0_7 = arith.constant 0 : index
    %18 = vector.load %arg4[%c0_6, %c0_7] : memref<400x400xbf16, #tpu.memory_space<vmem>>, vector<400x400xbf16>
    %cst_8 = arith.constant dense<0.000000e+00> : vector<8x400xf32>
    %19 = tpu.matmul %17, %18, %cst_8 {dimension_numbers = #tpu.dot_dimension_numbers<[1], [0], [0], [1], [0, 0, 1, 1], [], []>} : vector<8x400xbf16>, vector<400x400xbf16>, vector<8x400xf32> -> vector<8x400xf32>
    %c0_9 = arith.constant 0 : index
    %c0_10 = arith.constant 0 : index
    %20 = vector.load %arg5[%c0_9, %c0_10] : memref<1x400xf32, #tpu.memory_space<vmem>>, vector<1x400xf32>
    %21 = vector.broadcast %20 : vector<1x400xf32> to vector<8x400xf32>
    %22 = arith.addf %19, %21 : vector<8x400xf32>
    %cst_11 = arith.constant 0.000000e+00 : f32
    %23 = vector.broadcast %cst_11 : f32 to vector<8x400xf32>
    %24 = arith.maximumf %22, %23 : vector<8x400xf32>
    %25 = arith.truncf %24 : vector<8x400xf32> to vector<8x400xbf16>
    %c0_12 = arith.constant 0 : index
    %c0_13 = arith.constant 0 : index
    %26 = vector.load %arg6[%c0_12, %c0_13] : memref<400x400xbf16, #tpu.memory_space<vmem>>, vector<400x400xbf16>
    %cst_14 = arith.constant dense<0.000000e+00> : vector<8x400xf32>
    %27 = tpu.matmul %25, %26, %cst_14 {dimension_numbers = #tpu.dot_dimension_numbers<[1], [0], [0], [1], [0, 0, 1, 1], [], []>} : vector<8x400xbf16>, vector<400x400xbf16>, vector<8x400xf32> -> vector<8x400xf32>
    %c0_15 = arith.constant 0 : index
    %c0_16 = arith.constant 0 : index
    %28 = vector.load %arg7[%c0_15, %c0_16] : memref<1x400xf32, #tpu.memory_space<vmem>>, vector<1x400xf32>
    %29 = vector.broadcast %28 : vector<1x400xf32> to vector<8x400xf32>
    %30 = arith.addf %27, %29 : vector<8x400xf32>
    %cst_17 = arith.constant 0.000000e+00 : f32
    %31 = vector.broadcast %cst_17 : f32 to vector<8x400xf32>
    %32 = arith.maximumf %30, %31 : vector<8x400xf32>
    %33 = arith.truncf %32 : vector<8x400xf32> to vector<8x400xbf16>
    %c0_18 = arith.constant 0 : index
    %c0_19 = arith.constant 0 : index
    %34 = vector.load %arg8[%c0_18, %c0_19] : memref<400x128xbf16, #tpu.memory_space<vmem>>, vector<400x128xbf16>
    %cst_20 = arith.constant dense<0.000000e+00> : vector<8x128xf32>
    %35 = tpu.matmul %33, %34, %cst_20 {dimension_numbers = #tpu.dot_dimension_numbers<[1], [0], [0], [1], [0, 0, 1, 1], [], []>} : vector<8x400xbf16>, vector<400x128xbf16>, vector<8x128xf32> -> vector<8x128xf32>
    %c0_21 = arith.constant 0 : index
    %c0_22 = arith.constant 0 : index
    %36 = vector.load %arg9[%c0_21, %c0_22] : memref<1x128xf32, #tpu.memory_space<vmem>>, vector<1x128xf32>
    %37 = vector.broadcast %36 : vector<1x128xf32> to vector<8x128xf32>
    %38 = arith.addf %35, %37 : vector<8x128xf32>
    %39 = arith.negf %38 : vector<8x128xf32>
    %40 = math.exp %39 : vector<8x128xf32>
    %cst_23 = arith.constant 1.000000e+00 : f32
    %41 = vector.broadcast %cst_23 : f32 to vector<8x128xf32>
    %42 = arith.addf %41, %40 : vector<8x128xf32>
    %43 = arith.divf %41, %42 : vector<8x128xf32>
    %c0_24 = arith.constant 0 : index
    %c0_25 = arith.constant 0 : index
    %44 = vector.load %arg10[%c0_24, %c0_25] : memref<8x128xf32, #tpu.memory_space<vmem>>, vector<8x128xf32>
    tpu.vector_store %arg10[%c0_24, %c0_25], %43 {strides = array<i32>} : memref<8x128xf32, #tpu.memory_space<vmem>>, vector<8x128xf32>,
    return
  }
  func.func @transform_0(%arg0: i32) -> (i32, i32) {
    %c0_i32 = arith.constant 0 : i32
    %c0_i32_0 = arith.constant 0 : i32
    return %arg0, %c0_i32 : i32, i32
  }
  func.func @transform_1(%arg0: i32) -> (i32, i32) {
    %c0_i32 = arith.constant 0 : i32
    %c0_i32_0 = arith.constant 0 : i32
    %c0_i32_1 = arith.constant 0 : i32
    return %c0_i32, %c0_i32_0 : i32, i32
  }
  func.func @transform_2(%arg0: i32) -> (i32, i32) {
    %c0_i32 = arith.constant 0 : i32
    %c0_i32_0 = arith.constant 0 : i32
    %c0_i32_1 = arith.constant 0 : i32
    return %c0_i32, %c0_i32_0 : i32, i32
  }
  func.func @transform_3(%arg0: i32) -> (i32, i32) {
    %c0_i32 = arith.constant 0 : i32
    %c0_i32_0 = arith.constant 0 : i32
    %c0_i32_1 = arith.constant 0 : i32
    return %c0_i32, %c0_i32_0 : i32, i32
  }
  func.func @transform_4(%arg0: i32) -> (i32, i32) {
    %c0_i32 = arith.constant 0 : i32
    %c0_i32_0 = arith.constant 0 : i32
    %c0_i32_1 = arith.constant 0 : i32
    return %c0_i32, %c0_i32_0 : i32, i32
  }
  func.func @transform_5(%arg0: i32) -> (i32, i32) {
    %c0_i32 = arith.constant 0 : i32
    %c0_i32_0 = arith.constant 0 : i32
    %c0_i32_1 = arith.constant 0 : i32
    return %c0_i32, %c0_i32_0 : i32, i32
  }
  func.func @transform_6(%arg0: i32) -> (i32, i32) {
    %c0_i32 = arith.constant 0 : i32
    %c0_i32_0 = arith.constant 0 : i32
    %c0_i32_1 = arith.constant 0 : i32
    return %c0_i32, %c0_i32_0 : i32, i32
  }
  func.func @transform_7(%arg0: i32) -> (i32, i32) {
    %c0_i32 = arith.constant 0 : i32
    %c0_i32_0 = arith.constant 0 : i32
    %c0_i32_1 = arith.constant 0 : i32
    return %c0_i32, %c0_i32_0 : i32, i32
  }
  func.func @transform_8(%arg0: i32) -> (i32, i32) {
    %c0_i32 = arith.constant 0 : i32
    %c0_i32_0 = arith.constant 0 : i32
    %c0_i32_1 = arith.constant 0 : i32
    return %c0_i32, %c0_i32_0 : i32, i32
  }
  func.func @transform_9(%arg0: i32) -> (i32, i32) {
    %c0_i32 = arith.constant 0 : i32
    %c0_i32_0 = arith.constant 0 : i32
    return %arg0, %c0_i32 : i32, i32
  }
}

</mosaic_0001>

<llo_original>
// kernel: tpu_custom_call.1
$region0: #{tpu_custom_call.1}
  #allocation0 [shape = 'u32[]', space=smem, size = 0x4, offset = 0x4, fixed_abs, tag = 'smem constant byte address 0x4 - core index']
  #allocation1 [shape = 'u32[72,128]{1,0:T(1,128)}', space=vmem, size = 0x9000, scoped, tag = 'internal scratch']
  %s0 = inlined_call_operand.vmem [shape: f32[8,2], index: 0, kind: input, shape index: {}]
  %s1 = inlined_call_operand.vmem [shape: f32[2,400], index: 1, kind: input, shape index: {}]
  %s2 = inlined_call_operand.hbm [shape: f32[1,400], index: 2, kind: input, shape index: {}]
  %s3 = inlined_call_operand.hbm [shape: bf16[400,400], index: 3, kind: input, shape index: {}]
  %s4 = inlined_call_operand.vmem [shape: f32[1,400], index: 4, kind: input, shape index: {}]
  %s5 = inlined_call_operand.hbm [shape: bf16[400,400], index: 5, kind: input, shape index: {}]
  %s6 = inlined_call_operand.hbm [shape: f32[1,400], index: 6, kind: input, shape index: {}]
  %s7 = inlined_call_operand.hbm [shape: bf16[400,128], index: 7, kind: input, shape index: {}]
  %s8 = inlined_call_operand.vmem [shape: f32[1,128], index: 8, kind: input, shape index: {}]
  %s9 = inlined_call_operand.hbm [shape: f32[8,128], index: 9, kind: output, shape index: {}]
  %s10 = sld [smem:[#allocation0]]
  $region66: #{tpu_custom_call.1} parent=0
    _
  %s12 = ssub.s32 1, %s10
  %s13 = scalar_select 0, %s12, %s10
  $region1: #{tpu_custom_call.1} parent=0
    #allocation2 [shape = 'u8[2048]{0}', space=vmem, size = 0x800, scoped, tag = 'input window, operand 2, single buffered']
    #allocation3 [shape = 's32[1]{0}', space=sflag, size = 0x4, scoped, tag = 'scoped memory for tpu_custom_call.1']
    #allocation4 [shape = 's32[1]{0}', space=sflag, size = 0x4, scoped, tag = 'scoped memory for tpu_custom_call.1']
    #allocation5 [shape = 'u8[409600]{0}', space=vmem, size = 0x64000, scoped, tag = 'input window, operand 3, single buffered']
    #allocation6 [shape = 's32[1]{0}', space=sflag, size = 0x4, scoped, tag = 'scoped memory for tpu_custom_call.1']
    #allocation7 [shape = 'u8[409600]{0}', space=vmem, size = 0x64000, scoped, tag = 'input window, operand 5, single buffered']
    #allocation8 [shape = 'u8[2048]{0}', space=vmem, size = 0x800, scoped, tag = 'input window, operand 6, single buffered']
    #allocation9 [shape = 's32[1]{0}', space=sflag, size = 0x4, scoped, tag = 'scoped memory for tpu_custom_call.1']
    #allocation10 [shape = 'u8[102400]{0}', space=vmem, size = 0x19000, scoped, tag = 'input window, operand 7, single buffered']
    #allocation11 [shape = 'u8[4096]{0}', space=vmem, size = 0x1000, scoped, tag = 'output window, operand 0, single buffered']
    %14 = vsyncpa [#allocation3], 0
    %15 = vsyncpa [#allocation6], 0
    %16 = vsyncpa [#allocation9], 0
    %17 = vsyncpa [#allocation4], 0
    // Predicated region
    $region2: #{tpu_custom_call.1} parent=1 // pred_check
      _
    $region3: #{tpu_custom_call.1} parent=1 // pred_check_branch
      %19 = sbr.rel (0) target = $region5
    $region4: #{tpu_custom_call.1} parent=1 // pred_region
      _
    $region5: #{tpu_custom_call.1} parent=1 // pred_fallthru
      _
    // Predicated region
    $region6: #{tpu_custom_call.1} parent=1 // pred_check
      _
    $region7: #{tpu_custom_call.1} parent=1 // pred_check_branch
      %21 = sbr.rel (0) target = $region9
    $region8: #{tpu_custom_call.1} parent=1 // pred_region
      _
    $region9: #{tpu_custom_call.1} parent=1 // pred_fallthru
      _
    // Predicated region
    $region10: #{tpu_custom_call.1} parent=1 // pred_check
      _
    $region11: #{tpu_custom_call.1} parent=1 // pred_check_branch
      %23 = sbr.rel (0) target = $region13
    $region12: #{tpu_custom_call.1} parent=1 // pred_region
      %25 = vsyncadd [#allocation3], 0
      %s27 = sshll.u32 %s2, 4
      %s28 = int_to_ptr.hbm [resolvable:$true] %s27
      %s29 = sshll.u32 [#allocation2], 4
      %s30 = int_to_ptr.vmem [resolvable:$true] %s29
      %32 = dma.hbm_to_vmem [thread:$0]  %s28, 64, %s30, [#allocation3]
    $region13: #{tpu_custom_call.1} parent=1 // pred_fallthru
      _
    // Predicated region
    $region14: #{tpu_custom_call.1} parent=1 // pred_check
      _
    $region15: #{tpu_custom_call.1} parent=1 // pred_check_branch
      %34 = sbr.rel (0) target = $region17
    $region16: #{tpu_custom_call.1} parent=1 // pred_region
      %36 = vsyncadd [#allocation6], 0
      %s37 = sshll.u32 %s3, 4
      %s38 = int_to_ptr.hbm [resolvable:$true] %s37
      %s39 = sshll.u32 [#allocation5], 4
      %s40 = int_to_ptr.vmem [resolvable:$true] %s39
      %45 = dma.hbm_to_vmem [thread:$0]  %s38, 12800, %s40, [#allocation6], 256, 256, 16
    $region17: #{tpu_custom_call.1} parent=1 // pred_fallthru
      _
    // Predicated region
    $region18: #{tpu_custom_call.1} parent=1 // pred_check
      _
    $region19: #{tpu_custom_call.1} parent=1 // pred_check_branch
      %47 = sbr.rel (0) target = $region21
    $region20: #{tpu_custom_call.1} parent=1 // pred_region
      _
    $region21: #{tpu_custom_call.1} parent=1 // pred_fallthru
      _
    // Predicated region
    $region22: #{tpu_custom_call.1} parent=1 // pred_check
      _
    $region23: #{tpu_custom_call.1} parent=1 // pred_check_branch
      %49 = sbr.rel (0) target = $region25
    $region24: #{tpu_custom_call.1} parent=1 // pred_region
      %51 = vsyncadd [#allocation6], 0
      %s52 = sshll.u32 %s5, 4
      %s53 = int_to_ptr.hbm [resolvable:$true] %s52
      %s54 = sshll.u32 [#allocation7], 4
      %s55 = int_to_ptr.vmem [resolvable:$true] %s54
      %60 = dma.hbm_to_vmem [thread:$0]  %s53, 12800, %s55, [#allocation6], 256, 256, 16
    $region25: #{tpu_custom_call.1} parent=1 // pred_fallthru
      _
    // Predicated region
    $region26: #{tpu_custom_call.1} parent=1 // pred_check
      _
    $region27: #{tpu_custom_call.1} parent=1 // pred_check_branch
      %62 = sbr.rel (0) target = $region29
    $region28: #{tpu_custom_call.1} parent=1 // pred_region
      %64 = vsyncadd [#allocation9], 0
      %s66 = sshll.u32 %s6, 4
      %s67 = int_to_ptr.hbm [resolvable:$true] %s66
      %s68 = sshll.u32 [#allocation8], 4
      %s69 = int_to_ptr.vmem [resolvable:$true] %s68
      %71 = dma.hbm_to_vmem [thread:$0]  %s67, 64, %s69, [#allocation9]
    $region29: #{tpu_custom_call.1} parent=1 // pred_fallthru
      _
    // Predicated region
    $region30: #{tpu_custom_call.1} parent=1 // pred_check
      _
    $region31: #{tpu_custom_call.1} parent=1 // pred_check_branch
      %73 = sbr.rel (0) target = $region33
    $region32: #{tpu_custom_call.1} parent=1 // pred_region
      %75 = vsyncadd [#allocation9], 0
      %s76 = sshll.u32 %s7, 4
      %s77 = int_to_ptr.hbm [resolvable:$true] %s76
      %s78 = sshll.u32 [#allocation10], 4
      %s79 = int_to_ptr.vmem [resolvable:$true] %s78
      %84 = dma.hbm_to_vmem [thread:$0]  %s77, 3200, %s79, [#allocation9], 64, 64, 4
    $region33: #{tpu_custom_call.1} parent=1 // pred_fallthru
      _
    // Predicated region
    $region34: #{tpu_custom_call.1} parent=1 // pred_check
      _
    $region35: #{tpu_custom_call.1} parent=1 // pred_check_branch
      %86 = sbr.rel (0) target = $region37
    $region36: #{tpu_custom_call.1} parent=1 // pred_region
      _
    $region37: #{tpu_custom_call.1} parent=1 // pred_fallthru
      _
    // Predicated region
    $region38: #{tpu_custom_call.1} parent=1 // pred_check
      _
    $region39: #{tpu_custom_call.1} parent=1 // pred_check_branch
      %88 = sbr.rel (0) target = $region41
    $region40: #{tpu_custom_call.1} parent=1 // pred_region
      %90 = dma.done [#allocation3], 64
    $region41: #{tpu_custom_call.1} parent=1 // pred_fallthru
      _
    // Predicated region
    $region42: #{tpu_custom_call.1} parent=1 // pred_check
      _
    $region43: #{tpu_custom_call.1} parent=1 // pred_check_branch
      %92 = sbr.rel (0) target = $region45
    $region44: #{tpu_custom_call.1} parent=1 // pred_region
      %94 = dma.done [#allocation6], 12800
    $region45: #{tpu_custom_call.1} parent=1 // pred_fallthru
      _
    // Predicated region
    $region46: #{tpu_custom_call.1} parent=1 // pred_check
      _
    $region47: #{tpu_custom_call.1} parent=1 // pred_check_branch
      %96 = sbr.rel (0) target = $region49
    $region48: #{tpu_custom_call.1} parent=1 // pred_region
      %98 = dma.done [#allocation6], 12800
    $region49: #{tpu_custom_call.1} parent=1 // pred_fallthru
      _
    // Predicated region
    $region50: #{tpu_custom_call.1} parent=1 // pred_check
      _
    $region51: #{tpu_custom_call.1} parent=1 // pred_check_branch
      %100 = sbr.rel (0) target = $region53
    $region52: #{tpu_custom_call.1} parent=1 // pred_region
      %102 = dma.done [#allocation9], 64
    $region53: #{tpu_custom_call.1} parent=1 // pred_fallthru
      _
    // Predicated region
    $region54: #{tpu_custom_call.1} parent=1 // pred_check
      _
    $region55: #{tpu_custom_call.1} parent=1 // pred_check_branch
      %104 = sbr.rel (0) target = $region57
    $region56: #{tpu_custom_call.1} parent=1 // pred_region
      %106 = dma.done [#allocation9], 3200
    $region57: #{tpu_custom_call.1} parent=1 // pred_fallthru
      _
    %v108 = vld [vmem:[%s0] sm:$0xff]
    %v109 = vld [vmem:[%s1] ss:$2 sm:$0xf]
    %111 = vset.pattern.permute.xlu0 0
    %112 = vperm.xlu0 %111, %v108
    %v113 = vpop.permute.xlu0 %112
    %v116 = vperm.slane %v109, 0
    %v117 = vperm.slane %v109, 1
    %v118 = vperm.slane %v109, 2
    %v119 = vperm.slane %v109, 3
    %v124 = vmul.f32 %v113, %v116
    %v125 = vmul.f32 %v113, %v117
    %v126 = vmul.f32 %v113, %v118
    %v127 = vmul.f32 %v113, %v119
    %s128 = scalar_lea.vmem %s1, 1
    %v129 = vld [vmem:[%s128] ss:$2 sm:$0xf]
    %130 = vset.pattern.permute.xlu0 1
    %131 = vperm.xlu0 %130, %v108
    %v132 = vpop.permute.xlu0 %131
    %v135 = vperm.slane %v129, 0
    %v136 = vperm.slane %v129, 1
    %v137 = vperm.slane %v129, 2
    %v138 = vperm.slane %v129, 3
    %v143 = vmul.f32 %v132, %v135
    %v144 = vmul.f32 %v132, %v136
    %v145 = vmul.f32 %v132, %v137
    %v146 = vmul.f32 %v132, %v138
    %v147 = vadd.f32 %v124, %v143
    %v148 = vadd.f32 %v125, %v144
    %v149 = vadd.f32 %v126, %v145
    %v150 = vadd.f32 %v127, %v146
    %v151 = vld [vmem:[#allocation2] sm:$0xf]
    %v153 = vperm.slane %v151, 0
    %v154 = vperm.slane %v151, 1
    %v155 = vperm.slane %v151, 2
    %v156 = vperm.slane %v151, 3
    %v161 = vadd.f32 %v147, %v153
    %v162 = vadd.f32 %v148, %v154
    %v163 = vadd.f32 %v149, %v155
    %v164 = vadd.f32 %v150, %v156
    %v165 = vmax.f32 %v161, 0.0
    %v166 = vmax.f32 %v162, 0.0
    %v167 = vmax.f32 %v163, 0.0
    %v168 = vmax.f32 %v164, 0.0
    %v169 = vpack.c.bf16 %v165, %v165
    %v170 = vpack.c.bf16 %v166, %v166
    %v171 = vpack.c.bf16 %v167, %v167
    %v172 = vpack.c.bf16 %v168, %v168
    %v173 = vld [vmem:[#allocation5] sm:$0xff]
    %v174 = vld [vmem:[#allocation5 + $0x8] sm:$0xff]
    %v175 = vld [vmem:[#allocation5 + $0x10] sm:$0xff]
    %v176 = vld [vmem:[#allocation5 + $0x18] sm:$0xff]
    %v177 = vld [vmem:[#allocation5 + $0x20] sm:$0xff]
    %v178 = vld [vmem:[#allocation5 + $0x28] sm:$0xff]
    %v179 = vld [vmem:[#allocation5 + $0x30] sm:$0xff]
    %v180 = vld [vmem:[#allocation5 + $0x38] sm:$0xff]
    %v181 = vld [vmem:[#allocation5 + $0x40] sm:$0xff]
    %v182 = vld [vmem:[#allocation5 + $0x48] sm:$0xff]
    %v183 = vld [vmem:[#allocation5 + $0x50] sm:$0xff]
    %v184 = vld [vmem:[#allocation5 + $0x58] sm:$0xff]
    %v185 = vld [vmem:[#allocation5 + $0x60] sm:$0xff]
    %v186 = vld [vmem:[#allocation5 + $0x68] sm:$0xff]
    %v187 = vld [vmem:[#allocation5 + $0x70] sm:$0xff]
    %v188 = vld [vmem:[#allocation5 + $0x78] sm:$0xff]
    %v189 = vld [vmem:[#allocation5 + $0x80] sm:$0xff]
    %v190 = vld [vmem:[#allocation5 + $0x88] sm:$0xff]
    %v191 = vld [vmem:[#allocation5 + $0x90] sm:$0xff]
    %v192 = vld [vmem:[#allocation5 + $0x98] sm:$0xff]
    %v193 = vld [vmem:[#allocation5 + $0xa0] sm:$0xff]
    %v194 = vld [vmem:[#allocation5 + $0xa8] sm:$0xff]
    %v195 = vld [vmem:[#allocation5 + $0xb0] sm:$0xff]
    %v196 = vld [vmem:[#allocation5 + $0xb8] sm:$0xff]
    %v197 = vld [vmem:[#allocation5 + $0xc0] sm:$0xff]
    %v198 = vld [vmem:[#allocation5 + $0xc8] sm:$0xff]
    %v199 = vld [vmem:[#allocation5 + $0xd0] sm:$0xff]
    %v200 = vld [vmem:[#allocation5 + $0xd8] sm:$0xff]
    %v201 = vld [vmem:[#allocation5 + $0xe0] sm:$0xff]
    %v202 = vld [vmem:[#allocation5 + $0xe8] sm:$0xff]
    %v203 = vld [vmem:[#allocation5 + $0xf0] sm:$0xff]
    %v204 = vld [vmem:[#allocation5 + $0xf8] sm:$0xff]
    %v205 = vld [vmem:[#allocation5 + $0x100] sm:$0xff]
    %v206 = vld [vmem:[#allocation5 + $0x108] sm:$0xff]
    %v207 = vld [vmem:[#allocation5 + $0x110] sm:$0xff]
    %v208 = vld [vmem:[#allocation5 + $0x118] sm:$0xff]
    %v209 = vld [vmem:[#allocation5 + $0x120] sm:$0xff]
    %v210 = vld [vmem:[#allocation5 + $0x128] sm:$0xff]
    %v211 = vld [vmem:[#allocation5 + $0x130] sm:$0xff]
    %v212 = vld [vmem:[#allocation5 + $0x138] sm:$0xff]
    %v213 = vld [vmem:[#allocation5 + $0x140] sm:$0xff]
    %v214 = vld [vmem:[#allocation5 + $0x148] sm:$0xff]
    %v215 = vld [vmem:[#allocation5 + $0x150] sm:$0xff]
    %v216 = vld [vmem:[#allocation5 + $0x158] sm:$0xff]
    %v217 = vld [vmem:[#allocation5 + $0x160] sm:$0xff]
    %v218 = vld [vmem:[#allocation5 + $0x168] sm:$0xff]
    %v219 = vld [vmem:[#allocation5 + $0x170] sm:$0xff]
    %v220 = vld [vmem:[#allocation5 + $0x178] sm:$0xff]
    %v221 = vld [vmem:[#allocation5 + $0x180] sm:$0xff]
    %v222 = vld [vmem:[#allocation5 + $0x188] sm:$0xff]
    %v223 = vld [vmem:[#allocation5 + $0x190] sm:$0xff]
    %v224 = vld [vmem:[#allocation5 + $0x198] sm:$0xff]
    %v225 = vld [vmem:[#allocation5 + $0x1a0] sm:$0xff]
    %v226 = vld [vmem:[#allocation5 + $0x1a8] sm:$0xff]
    %v227 = vld [vmem:[#allocation5 + $0x1b0] sm:$0xff]
    %v228 = vld [vmem:[#allocation5 + $0x1b8] sm:$0xff]
    %v229 = vld [vmem:[#allocation5 + $0x1c0] sm:$0xff]
    %v230 = vld [vmem:[#allocation5 + $0x1c8] sm:$0xff]
    %v231 = vld [vmem:[#allocation5 + $0x1d0] sm:$0xff]
    %v232 = vld [vmem:[#allocation5 + $0x1d8] sm:$0xff]
    %v233 = vld [vmem:[#allocation5 + $0x1e0] sm:$0xff]
    %v234 = vld [vmem:[#allocation5 + $0x1e8] sm:$0xff]
    %v235 = vld [vmem:[#allocation5 + $0x1f0] sm:$0xff]
    %v236 = vld [vmem:[#allocation5 + $0x1f8] sm:$0xff]
    %v237 = vld [vmem:[#allocation5 + $0x200] sm:$0xff]
    %v238 = vld [vmem:[#allocation5 + $0x208] sm:$0xff]
    %v239 = vld [vmem:[#allocation5 + $0x210] sm:$0xff]
    %v240 = vld [vmem:[#allocation5 + $0x218] sm:$0xff]
    %v241 = vld [vmem:[#allocation5 + $0x220] sm:$0xff]
    %v242 = vld [vmem:[#allocation5 + $0x228] sm:$0xff]
    %v243 = vld [vmem:[#allocation5 + $0x230] sm:$0xff]
    %v244 = vld [vmem:[#allocation5 + $0x238] sm:$0xff]
    %v245 = vld [vmem:[#allocation5 + $0x240] sm:$0xff]
    %v246 = vld [vmem:[#allocation5 + $0x248] sm:$0xff]
    %v247 = vld [vmem:[#allocation5 + $0x250] sm:$0xff]
    %v248 = vld [vmem:[#allocation5 + $0x258] sm:$0xff]
    %v249 = vld [vmem:[#allocation5 + $0x260] sm:$0xff]
    %v250 = vld [vmem:[#allocation5 + $0x268] sm:$0xff]
    %v251 = vld [vmem:[#allocation5 + $0x270] sm:$0xff]
    %v252 = vld [vmem:[#allocation5 + $0x278] sm:$0xff]
    %v253 = vld [vmem:[#allocation5 + $0x280] sm:$0xff]
    %v254 = vld [vmem:[#allocation5 + $0x288] sm:$0xff]
    %v255 = vld [vmem:[#allocation5 + $0x290] sm:$0xff]
    %v256 = vld [vmem:[#allocation5 + $0x298] sm:$0xff]
    %v257 = vld [vmem:[#allocation5 + $0x2a0] sm:$0xff]
    %v258 = vld [vmem:[#allocation5 + $0x2a8] sm:$0xff]
    %v259 = vld [vmem:[#allocation5 + $0x2b0] sm:$0xff]
    %v260 = vld [vmem:[#allocation5 + $0x2b8] sm:$0xff]
    %v261 = vld [vmem:[#allocation5 + $0x2c0] sm:$0xff]
    %v262 = vld [vmem:[#allocation5 + $0x2c8] sm:$0xff]
    %v263 = vld [vmem:[#allocation5 + $0x2d0] sm:$0xff]
    %v264 = vld [vmem:[#allocation5 + $0x2d8] sm:$0xff]
    %v265 = vld [vmem:[#allocation5 + $0x2e0] sm:$0xff]
    %v266 = vld [vmem:[#allocation5 + $0x2e8] sm:$0xff]
    %v267 = vld [vmem:[#allocation5 + $0x2f0] sm:$0xff]
    %v268 = vld [vmem:[#allocation5 + $0x2f8] sm:$0xff]
    %v269 = vld [vmem:[#allocation5 + $0x300] sm:$0xff]
    %v270 = vld [vmem:[#allocation5 + $0x308] sm:$0xff]
    %v271 = vld [vmem:[#allocation5 + $0x310] sm:$0xff]
    %v272 = vld [vmem:[#allocation5 + $0x318] sm:$0xff]
    %v273 = vld [vmem:[%s4] sm:$0xf]
    %v275 = vperm.slane %v273, 0
    %v276 = vperm.slane %v273, 1
    %v277 = vperm.slane %v273, 2
    %v278 = vperm.slane %v273, 3
    %v383 = vunpack.c.l.b16 %v173
    %v384 = vunpack.c.h.b16 %v173
    %v385 = vunpack.c.l.b16 %v174
    %v386 = vunpack.c.h.b16 %v174
    %v387 = vunpack.c.l.b16 %v175
    %v388 = vunpack.c.h.b16 %v175
    %v389 = vunpack.c.l.b16 %v176
    %v390 = vunpack.c.h.b16 %v176
    %v391 = vunpack.c.l.b16 %v177
    %v392 = vunpack.c.h.b16 %v177
    %v393 = vunpack.c.l.b16 %v178
    %v394 = vunpack.c.h.b16 %v178
    %v395 = vunpack.c.l.b16 %v179
    %v396 = vunpack.c.h.b16 %v179
    %v397 = vunpack.c.l.b16 %v180
    %v398 = vunpack.c.h.b16 %v180
    %v399 = vunpack.c.l.b16 %v181
    %v400 = vunpack.c.h.b16 %v181
    %v401 = vunpack.c.l.b16 %v182
    %v402 = vunpack.c.h.b16 %v182
    %v403 = vunpack.c.l.b16 %v183
    %v404 = vunpack.c.h.b16 %v183
    %v405 = vunpack.c.l.b16 %v184
    %v406 = vunpack.c.h.b16 %v184
    %v407 = vunpack.c.l.b16 %v185
    %v408 = vunpack.c.h.b16 %v185
    %v409 = vunpack.c.l.b16 %v186
    %v410 = vunpack.c.h.b16 %v186
    %v411 = vunpack.c.l.b16 %v187
    %v412 = vunpack.c.h.b16 %v187
    %v413 = vunpack.c.l.b16 %v188
    %v414 = vunpack.c.h.b16 %v188
    %v415 = vunpack.c.l.b16 %v189
    %v416 = vunpack.c.h.b16 %v189
    %v417 = vunpack.c.l.b16 %v190
    %v418 = vunpack.c.h.b16 %v190
    %v419 = vunpack.c.l.b16 %v191
    %v420 = vunpack.c.h.b16 %v191
    %v421 = vunpack.c.l.b16 %v192
    %v422 = vunpack.c.h.b16 %v192
    %v423 = vunpack.c.l.b16 %v193
    %v424 = vunpack.c.h.b16 %v193
    %v425 = vunpack.c.l.b16 %v194
    %v426 = vunpack.c.h.b16 %v194
    %v427 = vunpack.c.l.b16 %v195
    %v428 = vunpack.c.h.b16 %v195
    %v429 = vunpack.c.l.b16 %v196
    %v430 = vunpack.c.h.b16 %v196
    %v431 = vunpack.c.l.b16 %v197
    %v432 = vunpack.c.h.b16 %v197
    %v433 = vunpack.c.l.b16 %v198
    %v434 = vunpack.c.h.b16 %v198
    %v435 = vunpack.c.l.b16 %v199
    %v436 = vunpack.c.h.b16 %v199
    %v437 = vunpack.c.l.b16 %v200
    %v438 = vunpack.c.h.b16 %v200
    %v439 = vunpack.c.l.b16 %v201
    %v440 = vunpack.c.h.b16 %v201
    %v441 = vunpack.c.l.b16 %v202
    %v442 = vunpack.c.h.b16 %v202
    %v443 = vunpack.c.l.b16 %v203
    %v444 = vunpack.c.h.b16 %v203
    %v445 = vunpack.c.l.b16 %v204
    %v446 = vunpack.c.h.b16 %v204
    %v447 = vunpack.c.l.b16 %v205
    %v448 = vunpack.c.h.b16 %v205
    %v449 = vunpack.c.l.b16 %v206
    %v450 = vunpack.c.h.b16 %v206
    %v451 = vunpack.c.l.b16 %v207
    %v452 = vunpack.c.h.b16 %v207
    %v453 = vunpack.c.l.b16 %v208
    %v454 = vunpack.c.h.b16 %v208
    %v455 = vunpack.c.l.b16 %v209
    %v456 = vunpack.c.h.b16 %v209
    %v457 = vunpack.c.l.b16 %v210
    %v458 = vunpack.c.h.b16 %v210
    %v459 = vunpack.c.l.b16 %v211
    %v460 = vunpack.c.h.b16 %v211
    %v461 = vunpack.c.l.b16 %v212
    %v462 = vunpack.c.h.b16 %v212
    %v463 = vunpack.c.l.b16 %v213
    %v464 = vunpack.c.h.b16 %v213
    %v465 = vunpack.c.l.b16 %v214
    %v466 = vunpack.c.h.b16 %v214
    %v467 = vunpack.c.l.b16 %v215
    %v468 = vunpack.c.h.b16 %v215
    %v469 = vunpack.c.l.b16 %v216
    %v470 = vunpack.c.h.b16 %v216
    %v471 = vunpack.c.l.b16 %v217
    %v472 = vunpack.c.h.b16 %v217
    %v473 = vunpack.c.l.b16 %v218
    %v474 = vunpack.c.h.b16 %v218
    %v475 = vunpack.c.l.b16 %v219
    %v476 = vunpack.c.h.b16 %v219
    %v477 = vunpack.c.l.b16 %v220
    %v478 = vunpack.c.h.b16 %v220
    %v479 = vunpack.c.l.b16 %v221
    %v480 = vunpack.c.h.b16 %v221
    %v481 = vunpack.c.l.b16 %v222
    %v482 = vunpack.c.h.b16 %v222
    %v483 = vunpack.c.l.b16 %v223
    %v484 = vunpack.c.h.b16 %v223
    %v485 = vunpack.c.l.b16 %v224
    %v486 = vunpack.c.h.b16 %v224
    %v487 = vunpack.c.l.b16 %v225
    %v488 = vunpack.c.h.b16 %v225
    %v489 = vunpack.c.l.b16 %v226
    %v490 = vunpack.c.h.b16 %v226
    %v491 = vunpack.c.l.b16 %v227
    %v492 = vunpack.c.h.b16 %v227
    %v493 = vunpack.c.l.b16 %v228
    %v494 = vunpack.c.h.b16 %v228
    %v495 = vunpack.c.l.b16 %v229
    %v496 = vunpack.c.h.b16 %v229
    %v497 = vunpack.c.l.b16 %v230
    %v498 = vunpack.c.h.b16 %v230
    %v499 = vunpack.c.l.b16 %v231
    %v500 = vunpack.c.h.b16 %v231
    %v501 = vunpack.c.l.b16 %v232
    %v502 = vunpack.c.h.b16 %v232
    %v503 = vunpack.c.l.b16 %v233
    %v504 = vunpack.c.h.b16 %v233
    %v505 = vunpack.c.l.b16 %v234
    %v506 = vunpack.c.h.b16 %v234
    %v507 = vunpack.c.l.b16 %v235
    %v508 = vunpack.c.h.b16 %v235
    %v509 = vunpack.c.l.b16 %v236
    %v510 = vunpack.c.h.b16 %v236
    %v511 = vunpack.c.l.b16 %v237
    %v512 = vunpack.c.h.b16 %v237
    %v513 = vunpack.c.l.b16 %v238
    %v514 = vunpack.c.h.b16 %v238
    %v515 = vunpack.c.l.b16 %v239
    %v516 = vunpack.c.h.b16 %v239
    %v517 = vunpack.c.l.b16 %v240
    %v518 = vunpack.c.h.b16 %v240
    %v519 = vunpack.c.l.b16 %v241
    %v520 = vunpack.c.h.b16 %v241
    %v521 = vunpack.c.l.b16 %v242
    %v522 = vunpack.c.h.b16 %v242
    %v523 = vunpack.c.l.b16 %v243
    %v524 = vunpack.c.h.b16 %v243
    %v525 = vunpack.c.l.b16 %v244
    %v526 = vunpack.c.h.b16 %v244
    %v527 = vunpack.c.l.b16 %v245
    %v528 = vunpack.c.h.b16 %v245
    %v529 = vunpack.c.l.b16 %v246
    %v530 = vunpack.c.h.b16 %v246
    %v531 = vunpack.c.l.b16 %v247
    %v532 = vunpack.c.h.b16 %v247
    %v533 = vunpack.c.l.b16 %v248
    %v534 = vunpack.c.h.b16 %v248
    %v535 = vunpack.c.l.b16 %v249
    %v536 = vunpack.c.h.b16 %v249
    %v537 = vunpack.c.l.b16 %v250
    %v538 = vunpack.c.h.b16 %v250
    %v539 = vunpack.c.l.b16 %v251
    %v540 = vunpack.c.h.b16 %v251
    %v541 = vunpack.c.l.b16 %v252
    %v542 = vunpack.c.h.b16 %v252
    %v543 = vunpack.c.l.b16 %v253
    %v544 = vunpack.c.h.b16 %v253
    %v545 = vunpack.c.l.b16 %v254
    %v546 = vunpack.c.h.b16 %v254
    %v547 = vunpack.c.l.b16 %v255
    %v548 = vunpack.c.h.b16 %v255
    %v549 = vunpack.c.l.b16 %v256
    %v550 = vunpack.c.h.b16 %v256
    %v551 = vunpack.c.l.b16 %v257
    %v552 = vunpack.c.h.b16 %v257
    %v553 = vunpack.c.l.b16 %v258
    %v554 = vunpack.c.h.b16 %v258
    %v555 = vunpack.c.l.b16 %v259
    %v556 = vunpack.c.h.b16 %v259
    %v557 = vunpack.c.l.b16 %v260
    %v558 = vunpack.c.h.b16 %v260
    %v559 = vunpack.c.l.b16 %v261
    %v560 = vunpack.c.h.b16 %v261
    %v561 = vunpack.c.l.b16 %v262
    %v562 = vunpack.c.h.b16 %v262
    %v563 = vunpack.c.l.b16 %v263
    %v564 = vunpack.c.h.b16 %v263
    %v565 = vunpack.c.l.b16 %v264
    %v566 = vunpack.c.h.b16 %v264
    %v567 = vunpack.c.l.b16 %v265
    %v568 = vunpack.c.h.b16 %v265
    %v569 = vunpack.c.l.b16 %v266
    %v570 = vunpack.c.h.b16 %v266
    %v571 = vunpack.c.l.b16 %v267
    %v572 = vunpack.c.h.b16 %v267
    %v573 = vunpack.c.l.b16 %v268
    %v574 = vunpack.c.h.b16 %v268
    %v575 = vunpack.c.l.b16 %v269
    %v576 = vunpack.c.h.b16 %v269
    %v577 = vunpack.c.l.b16 %v270
    %v578 = vunpack.c.h.b16 %v270
    %v579 = vunpack.c.l.b16 %v271
    %v580 = vunpack.c.h.b16 %v271
    %v581 = vunpack.c.l.b16 %v272
    %v582 = vunpack.c.h.b16 %v272
    %v583 = vpack.c.b16 %v387, %v383
    %v584 = vpack.c.b16 %v388, %v384
    %v585 = vpack.c.b16 %v389, %v385
    %v586 = vpack.c.b16 %v390, %v386
    %v587 = vpack.c.b16 %v395, %v391
    %v588 = vpack.c.b16 %v396, %v392
    %v589 = vpack.c.b16 %v397, %v393
    %v590 = vpack.c.b16 %v398, %v394
    %v591 = vpack.c.b16 %v403, %v399
    %v592 = vpack.c.b16 %v404, %v400
    %v593 = vpack.c.b16 %v405, %v401
    %v594 = vpack.c.b16 %v406, %v402
    %v595 = vpack.c.b16 %v411, %v407
    %v596 = vpack.c.b16 %v412, %v408
    %v597 = vpack.c.b16 %v413, %v409
    %v598 = vpack.c.b16 %v414, %v410
    %v599 = vpack.c.b16 %v419, %v415
    %v600 = vpack.c.b16 %v420, %v416
    %v601 = vpack.c.b16 %v421, %v417
    %v602 = vpack.c.b16 %v422, %v418
    %v603 = vpack.c.b16 %v427, %v423
    %v604 = vpack.c.b16 %v428, %v424
    %v605 = vpack.c.b16 %v429, %v425
    %v606 = vpack.c.b16 %v430, %v426
    %v607 = vpack.c.b16 %v435, %v431
    %v608 = vpack.c.b16 %v436, %v432
    %v609 = vpack.c.b16 %v437, %v433
    %v610 = vpack.c.b16 %v438, %v434
    %v611 = vpack.c.b16 %v443, %v439
    %v612 = vpack.c.b16 %v444, %v440
    %v613 = vpack.c.b16 %v445, %v441
    %v614 = vpack.c.b16 %v446, %v442
    %v615 = vpack.c.b16 %v451, %v447
    %v616 = vpack.c.b16 %v452, %v448
    %v617 = vpack.c.b16 %v453, %v449
    %v618 = vpack.c.b16 %v454, %v450
    %v619 = vpack.c.b16 %v459, %v455
    %v620 = vpack.c.b16 %v460, %v456
    %v621 = vpack.c.b16 %v461, %v457
    %v622 = vpack.c.b16 %v462, %v458
    %v623 = vpack.c.b16 %v467, %v463
    %v624 = vpack.c.b16 %v468, %v464
    %v625 = vpack.c.b16 %v469, %v465
    %v626 = vpack.c.b16 %v470, %v466
    %v627 = vpack.c.b16 %v475, %v471
    %v628 = vpack.c.b16 %v476, %v472
    %v629 = vpack.c.b16 %v477, %v473
    %v630 = vpack.c.b16 %v478, %v474
    %v631 = vpack.c.b16 %v483, %v479
    %v632 = vpack.c.b16 %v484, %v480
    %v633 = vpack.c.b16 %v485, %v481
    %v634 = vpack.c.b16 %v486, %v482
    %v635 = vpack.c.b16 %v491, %v487
    %v636 = vpack.c.b16 %v492, %v488
    %v637 = vpack.c.b16 %v493, %v489
    %v638 = vpack.c.b16 %v494, %v490
    %v639 = vpack.c.b16 %v499, %v495
    %v640 = vpack.c.b16 %v500, %v496
    %v641 = vpack.c.b16 %v501, %v497
    %v642 = vpack.c.b16 %v502, %v498
    %v643 = vpack.c.b16 %v507, %v503
    %v644 = vpack.c.b16 %v508, %v504
    %v645 = vpack.c.b16 %v509, %v505
    %v646 = vpack.c.b16 %v510, %v506
    %v647 = vpack.c.b16 %v515, %v511
    %v648 = vpack.c.b16 %v516, %v512
    %v649 = vpack.c.b16 %v517, %v513
    %v650 = vpack.c.b16 %v518, %v514
    %v651 = vpack.c.b16 %v523, %v519
    %v652 = vpack.c.b16 %v524, %v520
    %v653 = vpack.c.b16 %v525, %v521
    %v654 = vpack.c.b16 %v526, %v522
    %v655 = vpack.c.b16 %v531, %v527
    %v656 = vpack.c.b16 %v532, %v528
    %v657 = vpack.c.b16 %v533, %v529
    %v658 = vpack.c.b16 %v534, %v530
    %v659 = vpack.c.b16 %v539, %v535
    %v660 = vpack.c.b16 %v540, %v536
    %v661 = vpack.c.b16 %v541, %v537
    %v662 = vpack.c.b16 %v542, %v538
    %v663 = vpack.c.b16 %v547, %v543
    %v664 = vpack.c.b16 %v548, %v544
    %v665 = vpack.c.b16 %v549, %v545
    %v666 = vpack.c.b16 %v550, %v546
    %v667 = vpack.c.b16 %v555, %v551
    %v668 = vpack.c.b16 %v556, %v552
    %v669 = vpack.c.b16 %v557, %v553
    %v670 = vpack.c.b16 %v558, %v554
    %v671 = vpack.c.b16 %v563, %v559
    %v672 = vpack.c.b16 %v564, %v560
    %v673 = vpack.c.b16 %v565, %v561
    %v674 = vpack.c.b16 %v566, %v562
    %v675 = vpack.c.b16 %v571, %v567
    %v676 = vpack.c.b16 %v572, %v568
    %v677 = vpack.c.b16 %v573, %v569
    %v678 = vpack.c.b16 %v574, %v570
    %v679 = vpack.c.b16 %v579, %v575
    %v680 = vpack.c.b16 %v580, %v576
    %v681 = vpack.c.b16 %v581, %v577
    %v682 = vpack.c.b16 %v582, %v578
    %vm783 = vcmask 130048
    %v785 = vsel %vm783, %v172, 0
    %787 = vmatpush.bf16.msra.mxu0 %v611
    %788 = vmatpush.bf16.msra.mxu0 %v607
    %789 = vmatpush.bf16.msra.mxu0 %v603
    %790 = vmatpush.bf16.msra.mxu0 %v599
    %791 = vmatpush.bf16.msra.mxu0 %v595
    %792 = vmatpush.bf16.msra.mxu0 %v591
    %793 = vmatpush.bf16.msra.mxu0 %v587
    %794 = vmatpush.bf16.msra.mxu0 %v583
    %795 = vmatmul.bf16.gmra.mxu0 %v169
    %v796 = vpop.f32.mrf.mxu0
    %v797 = vadd.f32 %v275, %v796
    %v798 = vpop.f32.mrf.mxu0
    %799 = vdwg.mxu0
    %800 = vmatpush.bf16.msra.mxu0 %v643
    %801 = vmatpush.bf16.msra.mxu0 %v639
    %802 = vmatpush.bf16.msra.mxu0 %v635
    %803 = vmatpush.bf16.msra.mxu0 %v631
    %804 = vmatpush.bf16.msra.mxu0 %v627
    %805 = vmatpush.bf16.msra.mxu0 %v623
    %806 = vmatpush.bf16.msra.mxu0 %v619
    %807 = vmatpush.bf16.msra.mxu0 %v615
    %808 = vmatmul.bf16.gmra.mxu0 %v170
    %v809 = vpop.f32.mrf.mxu0
    %v810 = vadd.f32 %v797, %v809
    %v811 = vpop.f32.mrf.mxu0
    %812 = vdwg.mxu0
    %813 = vmatpush.bf16.msra.mxu0 %v675
    %814 = vmatpush.bf16.msra.mxu0 %v671
    %815 = vmatpush.bf16.msra.mxu0 %v667
    %816 = vmatpush.bf16.msra.mxu0 %v663
    %817 = vmatpush.bf16.msra.mxu0 %v659
    %818 = vmatpush.bf16.msra.mxu0 %v655
    %819 = vmatpush.bf16.msra.mxu0 %v651
    %820 = vmatpush.bf16.msra.mxu0 %v647
    %821 = vmatmul.bf16.gmra.mxu0 %v171
    %v822 = vpop.f32.mrf.mxu0
    %v823 = vadd.f32 %v810, %v822
    %v824 = vpop.f32.mrf.mxu0
    %825 = vdwg.mxu0
    %826 = vmatpush.bf16.msra.mxu0 0
    %827 = vmatpush.bf16.msra.mxu0 0
    %828 = vmatpush.bf16.msra.mxu0 0
    %829 = vmatpush.bf16.msra.mxu0 0
    %830 = vmatpush.bf16.msra.mxu0 0
    %831 = vmatpush.bf16.msra.mxu0 0
    %832 = vmatpush.bf16.msra.mxu0 0
    %833 = vmatpush.bf16.msra.mxu0 %v679
    %834 = vmatmul.bf16.gmra.mxu0 %v785
    %v835 = vpop.f32.mrf.mxu0
    %v836 = vadd.f32 %v823, %v835
    %v837 = vpop.f32.mrf.mxu0
    %838 = vdwg.mxu0
    %839 = vmatpush.bf16.msra.mxu0 %v612
    %840 = vmatpush.bf16.msra.mxu0 %v608
    %841 = vmatpush.bf16.msra.mxu0 %v604
    %842 = vmatpush.bf16.msra.mxu0 %v600
    %843 = vmatpush.bf16.msra.mxu0 %v596
    %844 = vmatpush.bf16.msra.mxu0 %v592
    %845 = vmatpush.bf16.msra.mxu0 %v588
    %846 = vmatpush.bf16.msra.mxu0 %v584
    %847 = vmatmul.bf16.gmra.mxu0 %v169
    %v848 = vpop.f32.mrf.mxu0
    %v849 = vadd.f32 %v276, %v848
    %v850 = vpop.f32.mrf.mxu0
    %851 = vdwg.mxu0
    %852 = vmatpush.bf16.msra.mxu0 %v644
    %853 = vmatpush.bf16.msra.mxu0 %v640
    %854 = vmatpush.bf16.msra.mxu0 %v636
    %855 = vmatpush.bf16.msra.mxu0 %v632
    %856 = vmatpush.bf16.msra.mxu0 %v628
    %857 = vmatpush.bf16.msra.mxu0 %v624
    %858 = vmatpush.bf16.msra.mxu0 %v620
    %859 = vmatpush.bf16.msra.mxu0 %v616
    %860 = vmatmul.bf16.gmra.mxu0 %v170
    %v861 = vpop.f32.mrf.mxu0
    %v862 = vadd.f32 %v849, %v861
    %v863 = vpop.f32.mrf.mxu0
    %864 = vdwg.mxu0
    %865 = vmatpush.bf16.msra.mxu0 %v676
    %866 = vmatpush.bf16.msra.mxu0 %v672
    %867 = vmatpush.bf16.msra.mxu0 %v668
    %868 = vmatpush.bf16.msra.mxu0 %v664
    %869 = vmatpush.bf16.msra.mxu0 %v660
    %870 = vmatpush.bf16.msra.mxu0 %v656
    %871 = vmatpush.bf16.msra.mxu0 %v652
    %872 = vmatpush.bf16.msra.mxu0 %v648
    %873 = vmatmul.bf16.gmra.mxu0 %v171
    %v874 = vpop.f32.mrf.mxu0
    %v875 = vadd.f32 %v862, %v874
    %v876 = vpop.f32.mrf.mxu0
    %877 = vdwg.mxu0
    %878 = vmatpush.bf16.msra.mxu0 0
    %879 = vmatpush.bf16.msra.mxu0 0
    %880 = vmatpush.bf16.msra.mxu0 0
    %881 = vmatpush.bf16.msra.mxu0 0
    %882 = vmatpush.bf16.msra.mxu0 0
    %883 = vmatpush.bf16.msra.mxu0 0
    %884 = vmatpush.bf16.msra.mxu0 0
    %885 = vmatpush.bf16.msra.mxu0 %v680
    %886 = vmatmul.bf16.gmra.mxu0 %v785
    %v887 = vpop.f32.mrf.mxu0
    %v888 = vadd.f32 %v875, %v887
    %v889 = vpop.f32.mrf.mxu0
    %890 = vdwg.mxu0
    %891 = vmatpush.bf16.msra.mxu0 %v613
    %892 = vmatpush.bf16.msra.mxu0 %v609
    %893 = vmatpush.bf16.msra.mxu0 %v605
    %894 = vmatpush.bf16.msra.mxu0 %v601
    %895 = vmatpush.bf16.msra.mxu0 %v597
    %896 = vmatpush.bf16.msra.mxu0 %v593
    %897 = vmatpush.bf16.msra.mxu0 %v589
    %898 = vmatpush.bf16.msra.mxu0 %v585
    %899 = vmatmul.bf16.gmra.mxu0 %v169
    %v900 = vpop.f32.mrf.mxu0
    %v901 = vadd.f32 %v277, %v900
    %v902 = vpop.f32.mrf.mxu0
    %903 = vdwg.mxu0
    %904 = vmatpush.bf16.msra.mxu0 %v645
    %905 = vmatpush.bf16.msra.mxu0 %v641
    %906 = vmatpush.bf16.msra.mxu0 %v637
    %907 = vmatpush.bf16.msra.mxu0 %v633
    %908 = vmatpush.bf16.msra.mxu0 %v629
    %909 = vmatpush.bf16.msra.mxu0 %v625
    %910 = vmatpush.bf16.msra.mxu0 %v621
    %911 = vmatpush.bf16.msra.mxu0 %v617
    %912 = vmatmul.bf16.gmra.mxu0 %v170
    %v913 = vpop.f32.mrf.mxu0
    %v914 = vadd.f32 %v901, %v913
    %v915 = vpop.f32.mrf.mxu0
    %916 = vdwg.mxu0
    %917 = vmatpush.bf16.msra.mxu0 %v677
    %918 = vmatpush.bf16.msra.mxu0 %v673
    %919 = vmatpush.bf16.msra.mxu0 %v669
    %920 = vmatpush.bf16.msra.mxu0 %v665
    %921 = vmatpush.bf16.msra.mxu0 %v661
    %922 = vmatpush.bf16.msra.mxu0 %v657
    %923 = vmatpush.bf16.msra.mxu0 %v653
    %924 = vmatpush.bf16.msra.mxu0 %v649
    %925 = vmatmul.bf16.gmra.mxu0 %v171
    %v926 = vpop.f32.mrf.mxu0
    %v927 = vadd.f32 %v914, %v926
    %v928 = vpop.f32.mrf.mxu0
    %929 = vdwg.mxu0
    %930 = vmatpush.bf16.msra.mxu0 0
    %931 = vmatpush.bf16.msra.mxu0 0
    %932 = vmatpush.bf16.msra.mxu0 0
    %933 = vmatpush.bf16.msra.mxu0 0
    %934 = vmatpush.bf16.msra.mxu0 0
    %935 = vmatpush.bf16.msra.mxu0 0
    %936 = vmatpush.bf16.msra.mxu0 0
    %937 = vmatpush.bf16.msra.mxu0 %v681
    %938 = vmatmul.bf16.gmra.mxu0 %v785
    %v939 = vpop.f32.mrf.mxu0
    %v940 = vadd.f32 %v927, %v939
    %v941 = vpop.f32.mrf.mxu0
    %942 = vdwg.mxu0
    %943 = vmatpush.bf16.msra.mxu0 %v614
    %944 = vmatpush.bf16.msra.mxu0 %v610
    %945 = vmatpush.bf16.msra.mxu0 %v606
    %946 = vmatpush.bf16.msra.mxu0 %v602
    %947 = vmatpush.bf16.msra.mxu0 %v598
    %948 = vmatpush.bf16.msra.mxu0 %v594
    %949 = vmatpush.bf16.msra.mxu0 %v590
    %950 = vmatpush.bf16.msra.mxu0 %v586
    %951 = vmatmul.bf16.gmra.mxu0 %v169
    %v952 = vpop.f32.mrf.mxu0
    %v953 = vadd.f32 %v278, %v952
    %v954 = vpop.f32.mrf.mxu0
    %955 = vdwg.mxu0
    %956 = vmatpush.bf16.msra.mxu0 %v646
    %957 = vmatpush.bf16.msra.mxu0 %v642
    %958 = vmatpush.bf16.msra.mxu0 %v638
    %959 = vmatpush.bf16.msra.mxu0 %v634
    %960 = vmatpush.bf16.msra.mxu0 %v630
    %961 = vmatpush.bf16.msra.mxu0 %v626
    %962 = vmatpush.bf16.msra.mxu0 %v622
    %963 = vmatpush.bf16.msra.mxu0 %v618
    %964 = vmatmul.bf16.gmra.mxu0 %v170
    %v965 = vpop.f32.mrf.mxu0
    %v966 = vadd.f32 %v953, %v965
    %v967 = vpop.f32.mrf.mxu0
    %968 = vdwg.mxu0
    %969 = vmatpush.bf16.msra.mxu0 %v678
    %970 = vmatpush.bf16.msra.mxu0 %v674
    %971 = vmatpush.bf16.msra.mxu0 %v670
    %972 = vmatpush.bf16.msra.mxu0 %v666
    %973 = vmatpush.bf16.msra.mxu0 %v662
    %974 = vmatpush.bf16.msra.mxu0 %v658
    %975 = vmatpush.bf16.msra.mxu0 %v654
    %976 = vmatpush.bf16.msra.mxu0 %v650
    %977 = vmatmul.bf16.gmra.mxu0 %v171
    %v978 = vpop.f32.mrf.mxu0
    %v979 = vadd.f32 %v966, %v978
    %v980 = vpop.f32.mrf.mxu0
    %981 = vdwg.mxu0
    %982 = vmatpush.bf16.msra.mxu0 0
    %983 = vmatpush.bf16.msra.mxu0 0
    %984 = vmatpush.bf16.msra.mxu0 0
    %985 = vmatpush.bf16.msra.mxu0 0
    %986 = vmatpush.bf16.msra.mxu0 0
    %987 = vmatpush.bf16.msra.mxu0 0
    %988 = vmatpush.bf16.msra.mxu0 0
    %989 = vmatpush.bf16.msra.mxu0 %v682
    %990 = vmatmul.bf16.gmra.mxu0 %v785
    %v991 = vpop.f32.mrf.mxu0
    %v992 = vadd.f32 %v979, %v991
    %v993 = vpop.f32.mrf.mxu0
    %994 = vdwg.mxu0
    %v995 = vmax.f32 %v836, 0.0
    %v996 = vmax.f32 %v888, 0.0
    %v997 = vmax.f32 %v940, 0.0
    %v998 = vmax.f32 %v992, 0.0
    %v999 = vpack.c.bf16 %v995, %v995
    %v1000 = vpack.c.bf16 %v996, %v996
    %v1001 = vpack.c.bf16 %v997, %v997
    %v1002 = vpack.c.bf16 %v998, %v998
    %v1003 = vld [vmem:[#allocation7] sm:$0xff]
    %v1004 = vld [vmem:[#allocation7 + $0x8] sm:$0xff]
    %v1005 = vld [vmem:[#allocation7 + $0x10] sm:$0xff]
    %v1006 = vld [vmem:[#allocation7 + $0x18] sm:$0xff]
    %v1007 = vld [vmem:[#allocation7 + $0x20] sm:$0xff]
    %v1008 = vld [vmem:[#allocation7 + $0x28] sm:$0xff]
    %v1009 = vld [vmem:[#allocation7 + $0x30] sm:$0xff]
    %v1010 = vld [vmem:[#allocation7 + $0x38] sm:$0xff]
    %v1011 = vld [vmem:[#allocation7 + $0x40] sm:$0xff]
    %v1012 = vld [vmem:[#allocation7 + $0x48] sm:$0xff]
    %v1013 = vld [vmem:[#allocation7 + $0x50] sm:$0xff]
    %v1014 = vld [vmem:[#allocation7 + $0x58] sm:$0xff]
    %v1015 = vld [vmem:[#allocation7 + $0x60] sm:$0xff]
    %v1016 = vld [vmem:[#allocation7 + $0x68] sm:$0xff]
    %v1017 = vld [vmem:[#allocation7 + $0x70] sm:$0xff]
    %v1018 = vld [vmem:[#allocation7 + $0x78] sm:$0xff]
    %v1019 = vld [vmem:[#allocation7 + $0x80] sm:$0xff]
    %v1020 = vld [vmem:[#allocation7 + $0x88] sm:$0xff]
    %v1021 = vld [vmem:[#allocation7 + $0x90] sm:$0xff]
    %v1022 = vld [vmem:[#allocation7 + $0x98] sm:$0xff]
    %v1023 = vld [vmem:[#allocation7 + $0xa0] sm:$0xff]
    %v1024 = vld [vmem:[#allocation7 + $0xa8] sm:$0xff]
    %v1025 = vld [vmem:[#allocation7 + $0xb0] sm:$0xff]
    %v1026 = vld [vmem:[#allocation7 + $0xb8] sm:$0xff]
    %v1027 = vld [vmem:[#allocation7 + $0xc0] sm:$0xff]
    %v1028 = vld [vmem:[#allocation7 + $0xc8] sm:$0xff]
    %v1029 = vld [vmem:[#allocation7 + $0xd0] sm:$0xff]
    %v1030 = vld [vmem:[#allocation7 + $0xd8] sm:$0xff]
    %v1031 = vld [vmem:[#allocation7 + $0xe0] sm:$0xff]
    %v1032 = vld [vmem:[#allocation7 + $0xe8] sm:$0xff]
    %v1033 = vld [vmem:[#allocation7 + $0xf0] sm:$0xff]
    %v1034 = vld [vmem:[#allocation7 + $0xf8] sm:$0xff]
    %v1035 = vld [vmem:[#allocation7 + $0x100] sm:$0xff]
    %v1036 = vld [vmem:[#allocation7 + $0x108] sm:$0xff]
    %v1037 = vld [vmem:[#allocation7 + $0x110] sm:$0xff]
    %v1038 = vld [vmem:[#allocation7 + $0x118] sm:$0xff]
    %v1039 = vld [vmem:[#allocation7 + $0x120] sm:$0xff]
    %v1040 = vld [vmem:[#allocation7 + $0x128] sm:$0xff]
    %v1041 = vld [vmem:[#allocation7 + $0x130] sm:$0xff]
    %v1042 = vld [vmem:[#allocation7 + $0x138] sm:$0xff]
    %v1043 = vld [vmem:[#allocation7 + $0x140] sm:$0xff]
    %v1044 = vld [vmem:[#allocation7 + $0x148] sm:$0xff]
    %v1045 = vld [vmem:[#allocation7 + $0x150] sm:$0xff]
    %v1046 = vld [vmem:[#allocation7 + $0x158] sm:$0xff]
    %v1047 = vld [vmem:[#allocation7 + $0x160] sm:$0xff]
    %v1048 = vld [vmem:[#allocation7 + $0x168] sm:$0xff]
    %v1049 = vld [vmem:[#allocation7 + $0x170] sm:$0xff]
    %v1050 = vld [vmem:[#allocation7 + $0x178] sm:$0xff]
    %v1051 = vld [vmem:[#allocation7 + $0x180] sm:$0xff]
    %v1052 = vld [vmem:[#allocation7 + $0x188] sm:$0xff]
    %v1053 = vld [vmem:[#allocation7 + $0x190] sm:$0xff]
    %v1054 = vld [vmem:[#allocation7 + $0x198] sm:$0xff]
    %v1055 = vld [vmem:[#allocation7 + $0x1a0] sm:$0xff]
    %v1056 = vld [vmem:[#allocation7 + $0x1a8] sm:$0xff]
    %v1057 = vld [vmem:[#allocation7 + $0x1b0] sm:$0xff]
    %v1058 = vld [vmem:[#allocation7 + $0x1b8] sm:$0xff]
    %v1059 = vld [vmem:[#allocation7 + $0x1c0] sm:$0xff]
    %v1060 = vld [vmem:[#allocation7 + $0x1c8] sm:$0xff]
    %v1061 = vld [vmem:[#allocation7 + $0x1d0] sm:$0xff]
    %v1062 = vld [vmem:[#allocation7 + $0x1d8] sm:$0xff]
    %v1063 = vld [vmem:[#allocation7 + $0x1e0] sm:$0xff]
    %v1064 = vld [vmem:[#allocation7 + $0x1e8] sm:$0xff]
    %v1065 = vld [vmem:[#allocation7 + $0x1f0] sm:$0xff]
    %v1066 = vld [vmem:[#allocation7 + $0x1f8] sm:$0xff]
    %v1067 = vld [vmem:[#allocation7 + $0x200] sm:$0xff]
    %v1068 = vld [vmem:[#allocation7 + $0x208] sm:$0xff]
    %v1069 = vld [vmem:[#allocation7 + $0x210] sm:$0xff]
    %v1070 = vld [vmem:[#allocation7 + $0x218] sm:$0xff]
    %v1071 = vld [vmem:[#allocation7 + $0x220] sm:$0xff]
    %v1072 = vld [vmem:[#allocation7 + $0x228] sm:$0xff]
    %v1073 = vld [vmem:[#allocation7 + $0x230] sm:$0xff]
    %v1074 = vld [vmem:[#allocation7 + $0x238] sm:$0xff]
    %v1075 = vld [vmem:[#allocation7 + $0x240] sm:$0xff]
    %v1076 = vld [vmem:[#allocation7 + $0x248] sm:$0xff]
    %v1077 = vld [vmem:[#allocation7 + $0x250] sm:$0xff]
    %v1078 = vld [vmem:[#allocation7 + $0x258] sm:$0xff]
    %v1079 = vld [vmem:[#allocation7 + $0x260] sm:$0xff]
    %v1080 = vld [vmem:[#allocation7 + $0x268] sm:$0xff]
    %v1081 = vld [vmem:[#allocation7 + $0x270] sm:$0xff]
    %v1082 = vld [vmem:[#allocation7 + $0x278] sm:$0xff]
    %v1083 = vld [vmem:[#allocation7 + $0x280] sm:$0xff]
    %v1084 = vld [vmem:[#allocation7 + $0x288] sm:$0xff]
    %v1085 = vld [vmem:[#allocation7 + $0x290] sm:$0xff]
    %v1086 = vld [vmem:[#allocation7 + $0x298] sm:$0xff]
    %v1087 = vld [vmem:[#allocation7 + $0x2a0] sm:$0xff]
    %v1088 = vld [vmem:[#allocation7 + $0x2a8] sm:$0xff]
    %v1089 = vld [vmem:[#allocation7 + $0x2b0] sm:$0xff]
    %v1090 = vld [vmem:[#allocation7 + $0x2b8] sm:$0xff]
    %v1091 = vld [vmem:[#allocation7 + $0x2c0] sm:$0xff]
    %v1092 = vld [vmem:[#allocation7 + $0x2c8] sm:$0xff]
    %v1093 = vld [vmem:[#allocation7 + $0x2d0] sm:$0xff]
    %v1094 = vld [vmem:[#allocation7 + $0x2d8] sm:$0xff]
    %v1095 = vld [vmem:[#allocation7 + $0x2e0] sm:$0xff]
    %v1096 = vld [vmem:[#allocation7 + $0x2e8] sm:$0xff]
    %v1097 = vld [vmem:[#allocation7 + $0x2f0] sm:$0xff]
    %v1098 = vld [vmem:[#allocation7 + $0x2f8] sm:$0xff]
    %v1099 = vld [vmem:[#allocation7 + $0x300] sm:$0xff]
    %v1100 = vld [vmem:[#allocation7 + $0x308] sm:$0xff]
    %v1101 = vld [vmem:[#allocation7 + $0x310] sm:$0xff]
    %v1102 = vld [vmem:[#allocation7 + $0x318] sm:$0xff]
    %v1103 = vld [vmem:[#allocation8] sm:$0xf]
    %v1105 = vperm.slane %v1103, 0
    %v1106 = vperm.slane %v1103, 1
    %v1107 = vperm.slane %v1103, 2
    %v1108 = vperm.slane %v1103, 3
    %v1213 = vunpack.c.l.b16 %v1003
    %v1214 = vunpack.c.h.b16 %v1003
    %v1215 = vunpack.c.l.b16 %v1004
    %v1216 = vunpack.c.h.b16 %v1004
    %v1217 = vunpack.c.l.b16 %v1005
    %v1218 = vunpack.c.h.b16 %v1005
    %v1219 = vunpack.c.l.b16 %v1006
    %v1220 = vunpack.c.h.b16 %v1006
    %v1221 = vunpack.c.l.b16 %v1007
    %v1222 = vunpack.c.h.b16 %v1007
    %v1223 = vunpack.c.l.b16 %v1008
    %v1224 = vunpack.c.h.b16 %v1008
    %v1225 = vunpack.c.l.b16 %v1009
    %v1226 = vunpack.c.h.b16 %v1009
    %v1227 = vunpack.c.l.b16 %v1010
    %v1228 = vunpack.c.h.b16 %v1010
    %v1229 = vunpack.c.l.b16 %v1011
    %v1230 = vunpack.c.h.b16 %v1011
    %v1231 = vunpack.c.l.b16 %v1012
    %v1232 = vunpack.c.h.b16 %v1012
    %v1233 = vunpack.c.l.b16 %v1013
    %v1234 = vunpack.c.h.b16 %v1013
    %v1235 = vunpack.c.l.b16 %v1014
    %v1236 = vunpack.c.h.b16 %v1014
    %v1237 = vunpack.c.l.b16 %v1015
    %v1238 = vunpack.c.h.b16 %v1015
    %v1239 = vunpack.c.l.b16 %v1016
    %v1240 = vunpack.c.h.b16 %v1016
    %v1241 = vunpack.c.l.b16 %v1017
    %v1242 = vunpack.c.h.b16 %v1017
    %v1243 = vunpack.c.l.b16 %v1018
    %v1244 = vunpack.c.h.b16 %v1018
    %v1245 = vunpack.c.l.b16 %v1019
    %v1246 = vunpack.c.h.b16 %v1019
    %v1247 = vunpack.c.l.b16 %v1020
    %v1248 = vunpack.c.h.b16 %v1020
    %v1249 = vunpack.c.l.b16 %v1021
    %v1250 = vunpack.c.h.b16 %v1021
    %v1251 = vunpack.c.l.b16 %v1022
    %v1252 = vunpack.c.h.b16 %v1022
    %v1253 = vunpack.c.l.b16 %v1023
    %v1254 = vunpack.c.h.b16 %v1023
    %v1255 = vunpack.c.l.b16 %v1024
    %v1256 = vunpack.c.h.b16 %v1024
    %v1257 = vunpack.c.l.b16 %v1025
    %v1258 = vunpack.c.h.b16 %v1025
    %v1259 = vunpack.c.l.b16 %v1026
    %v1260 = vunpack.c.h.b16 %v1026
    %v1261 = vunpack.c.l.b16 %v1027
    %v1262 = vunpack.c.h.b16 %v1027
    %v1263 = vunpack.c.l.b16 %v1028
    %v1264 = vunpack.c.h.b16 %v1028
    %v1265 = vunpack.c.l.b16 %v1029
    %v1266 = vunpack.c.h.b16 %v1029
    %v1267 = vunpack.c.l.b16 %v1030
    %v1268 = vunpack.c.h.b16 %v1030
    %v1269 = vunpack.c.l.b16 %v1031
    %v1270 = vunpack.c.h.b16 %v1031
    %v1271 = vunpack.c.l.b16 %v1032
    %v1272 = vunpack.c.h.b16 %v1032
    %v1273 = vunpack.c.l.b16 %v1033
    %v1274 = vunpack.c.h.b16 %v1033
    %v1275 = vunpack.c.l.b16 %v1034
    %v1276 = vunpack.c.h.b16 %v1034
    %v1277 = vunpack.c.l.b16 %v1035
    %v1278 = vunpack.c.h.b16 %v1035
    %v1279 = vunpack.c.l.b16 %v1036
    %v1280 = vunpack.c.h.b16 %v1036
    %v1281 = vunpack.c.l.b16 %v1037
    %v1282 = vunpack.c.h.b16 %v1037
    %v1283 = vunpack.c.l.b16 %v1038
    %v1284 = vunpack.c.h.b16 %v1038
    %v1285 = vunpack.c.l.b16 %v1039
    %v1286 = vunpack.c.h.b16 %v1039
    %v1287 = vunpack.c.l.b16 %v1040
    %v1288 = vunpack.c.h.b16 %v1040
    %v1289 = vunpack.c.l.b16 %v1041
    %v1290 = vunpack.c.h.b16 %v1041
    %v1291 = vunpack.c.l.b16 %v1042
    %v1292 = vunpack.c.h.b16 %v1042
    %v1293 = vunpack.c.l.b16 %v1043
    %v1294 = vunpack.c.h.b16 %v1043
    %v1295 = vunpack.c.l.b16 %v1044
    %v1296 = vunpack.c.h.b16 %v1044
    %v1297 = vunpack.c.l.b16 %v1045
    %v1298 = vunpack.c.h.b16 %v1045
    %v1299 = vunpack.c.l.b16 %v1046
    %v1300 = vunpack.c.h.b16 %v1046
    %v1301 = vunpack.c.l.b16 %v1047
    %v1302 = vunpack.c.h.b16 %v1047
    %v1303 = vunpack.c.l.b16 %v1048
    %v1304 = vunpack.c.h.b16 %v1048
    %v1305 = vunpack.c.l.b16 %v1049
    %v1306 = vunpack.c.h.b16 %v1049
    %v1307 = vunpack.c.l.b16 %v1050
    %v1308 = vunpack.c.h.b16 %v1050
    %v1309 = vunpack.c.l.b16 %v1051
    %v1310 = vunpack.c.h.b16 %v1051
    %v1311 = vunpack.c.l.b16 %v1052
    %v1312 = vunpack.c.h.b16 %v1052
    %v1313 = vunpack.c.l.b16 %v1053
    %v1314 = vunpack.c.h.b16 %v1053
    %v1315 = vunpack.c.l.b16 %v1054
    %v1316 = vunpack.c.h.b16 %v1054
    %v1317 = vunpack.c.l.b16 %v1055
    %v1318 = vunpack.c.h.b16 %v1055
    %v1319 = vunpack.c.l.b16 %v1056
    %v1320 = vunpack.c.h.b16 %v1056
    %v1321 = vunpack.c.l.b16 %v1057
    %v1322 = vunpack.c.h.b16 %v1057
    %v1323 = vunpack.c.l.b16 %v1058
    %v1324 = vunpack.c.h.b16 %v1058
    %v1325 = vunpack.c.l.b16 %v1059
    %v1326 = vunpack.c.h.b16 %v1059
    %v1327 = vunpack.c.l.b16 %v1060
    %v1328 = vunpack.c.h.b16 %v1060
    %v1329 = vunpack.c.l.b16 %v1061
    %v1330 = vunpack.c.h.b16 %v1061
    %v1331 = vunpack.c.l.b16 %v1062
    %v1332 = vunpack.c.h.b16 %v1062
    %v1333 = vunpack.c.l.b16 %v1063
    %v1334 = vunpack.c.h.b16 %v1063
    %v1335 = vunpack.c.l.b16 %v1064
    %v1336 = vunpack.c.h.b16 %v1064
    %v1337 = vunpack.c.l.b16 %v1065
    %v1338 = vunpack.c.h.b16 %v1065
    %v1339 = vunpack.c.l.b16 %v1066
    %v1340 = vunpack.c.h.b16 %v1066
    %v1341 = vunpack.c.l.b16 %v1067
    %v1342 = vunpack.c.h.b16 %v1067
    %v1343 = vunpack.c.l.b16 %v1068
    %v1344 = vunpack.c.h.b16 %v1068
    %v1345 = vunpack.c.l.b16 %v1069
    %v1346 = vunpack.c.h.b16 %v1069
    %v1347 = vunpack.c.l.b16 %v1070
    %v1348 = vunpack.c.h.b16 %v1070
    %v1349 = vunpack.c.l.b16 %v1071
    %v1350 = vunpack.c.h.b16 %v1071
    %v1351 = vunpack.c.l.b16 %v1072
    %v1352 = vunpack.c.h.b16 %v1072
    %v1353 = vunpack.c.l.b16 %v1073
    %v1354 = vunpack.c.h.b16 %v1073
    %v1355 = vunpack.c.l.b16 %v1074
    %v1356 = vunpack.c.h.b16 %v1074
    %v1357 = vunpack.c.l.b16 %v1075
    %v1358 = vunpack.c.h.b16 %v1075
    %v1359 = vunpack.c.l.b16 %v1076
    %v1360 = vunpack.c.h.b16 %v1076
    %v1361 = vunpack.c.l.b16 %v1077
    %v1362 = vunpack.c.h.b16 %v1077
    %v1363 = vunpack.c.l.b16 %v1078
    %v1364 = vunpack.c.h.b16 %v1078
    %v1365 = vunpack.c.l.b16 %v1079
    %v1366 = vunpack.c.h.b16 %v1079
    %v1367 = vunpack.c.l.b16 %v1080
    %v1368 = vunpack.c.h.b16 %v1080
    %v1369 = vunpack.c.l.b16 %v1081
    %v1370 = vunpack.c.h.b16 %v1081
    %v1371 = vunpack.c.l.b16 %v1082
    %v1372 = vunpack.c.h.b16 %v1082
    %v1373 = vunpack.c.l.b16 %v1083
    %v1374 = vunpack.c.h.b16 %v1083
    %v1375 = vunpack.c.l.b16 %v1084
    %v1376 = vunpack.c.h.b16 %v1084
    %v1377 = vunpack.c.l.b16 %v1085
    %v1378 = vunpack.c.h.b16 %v1085
    %v1379 = vunpack.c.l.b16 %v1086
    %v1380 = vunpack.c.h.b16 %v1086
    %v1381 = vunpack.c.l.b16 %v1087
    %v1382 = vunpack.c.h.b16 %v1087
    %v1383 = vunpack.c.l.b16 %v1088
    %v1384 = vunpack.c.h.b16 %v1088
    %v1385 = vunpack.c.l.b16 %v1089
    %v1386 = vunpack.c.h.b16 %v1089
    %v1387 = vunpack.c.l.b16 %v1090
    %v1388 = vunpack.c.h.b16 %v1090
    %v1389 = vunpack.c.l.b16 %v1091
    %v1390 = vunpack.c.h.b16 %v1091
    %v1391 = vunpack.c.l.b16 %v1092
    %v1392 = vunpack.c.h.b16 %v1092
    %v1393 = vunpack.c.l.b16 %v1093
    %v1394 = vunpack.c.h.b16 %v1093
    %v1395 = vunpack.c.l.b16 %v1094
    %v1396 = vunpack.c.h.b16 %v1094
    %v1397 = vunpack.c.l.b16 %v1095
    %v1398 = vunpack.c.h.b16 %v1095
    %v1399 = vunpack.c.l.b16 %v1096
    %v1400 = vunpack.c.h.b16 %v1096
    %v1401 = vunpack.c.l.b16 %v1097
    %v1402 = vunpack.c.h.b16 %v1097
    %v1403 = vunpack.c.l.b16 %v1098
    %v1404 = vunpack.c.h.b16 %v1098
    %v1405 = vunpack.c.l.b16 %v1099
    %v1406 = vunpack.c.h.b16 %v1099
    %v1407 = vunpack.c.l.b16 %v1100
    %v1408 = vunpack.c.h.b16 %v1100
    %v1409 = vunpack.c.l.b16 %v1101
    %v1410 = vunpack.c.h.b16 %v1101
    %v1411 = vunpack.c.l.b16 %v1102
    %v1412 = vunpack.c.h.b16 %v1102
    %v1413 = vpack.c.b16 %v1217, %v1213
    %v1414 = vpack.c.b16 %v1218, %v1214
    %v1415 = vpack.c.b16 %v1219, %v1215
    %v1416 = vpack.c.b16 %v1220, %v1216
    %v1417 = vpack.c.b16 %v1225, %v1221
    %v1418 = vpack.c.b16 %v1226, %v1222
    %v1419 = vpack.c.b16 %v1227, %v1223
    %v1420 = vpack.c.b16 %v1228, %v1224
    %v1421 = vpack.c.b16 %v1233, %v1229
    %v1422 = vpack.c.b16 %v1234, %v1230
    %v1423 = vpack.c.b16 %v1235, %v1231
    %v1424 = vpack.c.b16 %v1236, %v1232
    %v1425 = vpack.c.b16 %v1241, %v1237
    %v1426 = vpack.c.b16 %v1242, %v1238
    %v1427 = vpack.c.b16 %v1243, %v1239
    %v1428 = vpack.c.b16 %v1244, %v1240
    %v1429 = vpack.c.b16 %v1249, %v1245
    %v1430 = vpack.c.b16 %v1250, %v1246
    %v1431 = vpack.c.b16 %v1251, %v1247
    %v1432 = vpack.c.b16 %v1252, %v1248
    %v1433 = vpack.c.b16 %v1257, %v1253
    %v1434 = vpack.c.b16 %v1258, %v1254
    %v1435 = vpack.c.b16 %v1259, %v1255
    %v1436 = vpack.c.b16 %v1260, %v1256
    %v1437 = vpack.c.b16 %v1265, %v1261
    %v1438 = vpack.c.b16 %v1266, %v1262
    %v1439 = vpack.c.b16 %v1267, %v1263
    %v1440 = vpack.c.b16 %v1268, %v1264
    %v1441 = vpack.c.b16 %v1273, %v1269
    %v1442 = vpack.c.b16 %v1274, %v1270
    %v1443 = vpack.c.b16 %v1275, %v1271
    %v1444 = vpack.c.b16 %v1276, %v1272
    %v1445 = vpack.c.b16 %v1281, %v1277
    %v1446 = vpack.c.b16 %v1282, %v1278
    %v1447 = vpack.c.b16 %v1283, %v1279
    %v1448 = vpack.c.b16 %v1284, %v1280
    %v1449 = vpack.c.b16 %v1289, %v1285
    %v1450 = vpack.c.b16 %v1290, %v1286
    %v1451 = vpack.c.b16 %v1291, %v1287
    %v1452 = vpack.c.b16 %v1292, %v1288
    %v1453 = vpack.c.b16 %v1297, %v1293
    %v1454 = vpack.c.b16 %v1298, %v1294
    %v1455 = vpack.c.b16 %v1299, %v1295
    %v1456 = vpack.c.b16 %v1300, %v1296
    %v1457 = vpack.c.b16 %v1305, %v1301
    %v1458 = vpack.c.b16 %v1306, %v1302
    %v1459 = vpack.c.b16 %v1307, %v1303
    %v1460 = vpack.c.b16 %v1308, %v1304
    %v1461 = vpack.c.b16 %v1313, %v1309
    %v1462 = vpack.c.b16 %v1314, %v1310
    %v1463 = vpack.c.b16 %v1315, %v1311
    %v1464 = vpack.c.b16 %v1316, %v1312
    %v1465 = vpack.c.b16 %v1321, %v1317
    %v1466 = vpack.c.b16 %v1322, %v1318
    %v1467 = vpack.c.b16 %v1323, %v1319
    %v1468 = vpack.c.b16 %v1324, %v1320
    %v1469 = vpack.c.b16 %v1329, %v1325
    %v1470 = vpack.c.b16 %v1330, %v1326
    %v1471 = vpack.c.b16 %v1331, %v1327
    %v1472 = vpack.c.b16 %v1332, %v1328
    %v1473 = vpack.c.b16 %v1337, %v1333
    %v1474 = vpack.c.b16 %v1338, %v1334
    %v1475 = vpack.c.b16 %v1339, %v1335
    %v1476 = vpack.c.b16 %v1340, %v1336
    %v1477 = vpack.c.b16 %v1345, %v1341
    %v1478 = vpack.c.b16 %v1346, %v1342
    %v1479 = vpack.c.b16 %v1347, %v1343
    %v1480 = vpack.c.b16 %v1348, %v1344
    %v1481 = vpack.c.b16 %v1353, %v1349
    %v1482 = vpack.c.b16 %v1354, %v1350
    %v1483 = vpack.c.b16 %v1355, %v1351
    %v1484 = vpack.c.b16 %v1356, %v1352
    %v1485 = vpack.c.b16 %v1361, %v1357
    %v1486 = vpack.c.b16 %v1362, %v1358
    %v1487 = vpack.c.b16 %v1363, %v1359
    %v1488 = vpack.c.b16 %v1364, %v1360
    %v1489 = vpack.c.b16 %v1369, %v1365
    %v1490 = vpack.c.b16 %v1370, %v1366
    %v1491 = vpack.c.b16 %v1371, %v1367
    %v1492 = vpack.c.b16 %v1372, %v1368
    %v1493 = vpack.c.b16 %v1377, %v1373
    %v1494 = vpack.c.b16 %v1378, %v1374
    %v1495 = vpack.c.b16 %v1379, %v1375
    %v1496 = vpack.c.b16 %v1380, %v1376
    %v1497 = vpack.c.b16 %v1385, %v1381
    %v1498 = vpack.c.b16 %v1386, %v1382
    %v1499 = vpack.c.b16 %v1387, %v1383
    %v1500 = vpack.c.b16 %v1388, %v1384
    %v1501 = vpack.c.b16 %v1393, %v1389
    %v1502 = vpack.c.b16 %v1394, %v1390
    %v1503 = vpack.c.b16 %v1395, %v1391
    %v1504 = vpack.c.b16 %v1396, %v1392
    %v1505 = vpack.c.b16 %v1401, %v1397
    %v1506 = vpack.c.b16 %v1402, %v1398
    %v1507 = vpack.c.b16 %v1403, %v1399
    %v1508 = vpack.c.b16 %v1404, %v1400
    %v1509 = vpack.c.b16 %v1409, %v1405
    %v1510 = vpack.c.b16 %v1410, %v1406
    %v1511 = vpack.c.b16 %v1411, %v1407
    %v1512 = vpack.c.b16 %v1412, %v1408
    %v1614 = vsel %vm783, %v1002, 0
    %1616 = vmatpush.bf16.msra.mxu0 %v1441
    %1617 = vmatpush.bf16.msra.mxu0 %v1437
    %1618 = vmatpush.bf16.msra.mxu0 %v1433
    %1619 = vmatpush.bf16.msra.mxu0 %v1429
    %1620 = vmatpush.bf16.msra.mxu0 %v1425
    %1621 = vmatpush.bf16.msra.mxu0 %v1421
    %1622 = vmatpush.bf16.msra.mxu0 %v1417
    %1623 = vmatpush.bf16.msra.mxu0 %v1413
    %1624 = vmatmul.bf16.gmra.mxu0 %v999
    %v1625 = vpop.f32.mrf.mxu0
    %v1626 = vadd.f32 %v1105, %v1625
    %v1627 = vpop.f32.mrf.mxu0
    %1628 = vdwg.mxu0
    %1629 = vmatpush.bf16.msra.mxu0 %v1473
    %1630 = vmatpush.bf16.msra.mxu0 %v1469
    %1631 = vmatpush.bf16.msra.mxu0 %v1465
    %1632 = vmatpush.bf16.msra.mxu0 %v1461
    %1633 = vmatpush.bf16.msra.mxu0 %v1457
    %1634 = vmatpush.bf16.msra.mxu0 %v1453
    %1635 = vmatpush.bf16.msra.mxu0 %v1449
    %1636 = vmatpush.bf16.msra.mxu0 %v1445
    %1637 = vmatmul.bf16.gmra.mxu0 %v1000
    %v1638 = vpop.f32.mrf.mxu0
    %v1639 = vadd.f32 %v1626, %v1638
    %v1640 = vpop.f32.mrf.mxu0
    %1641 = vdwg.mxu0
    %1642 = vmatpush.bf16.msra.mxu0 %v1505
    %1643 = vmatpush.bf16.msra.mxu0 %v1501
    %1644 = vmatpush.bf16.msra.mxu0 %v1497
    %1645 = vmatpush.bf16.msra.mxu0 %v1493
    %1646 = vmatpush.bf16.msra.mxu0 %v1489
    %1647 = vmatpush.bf16.msra.mxu0 %v1485
    %1648 = vmatpush.bf16.msra.mxu0 %v1481
    %1649 = vmatpush.bf16.msra.mxu0 %v1477
    %1650 = vmatmul.bf16.gmra.mxu0 %v1001
    %v1651 = vpop.f32.mrf.mxu0
    %v1652 = vadd.f32 %v1639, %v1651
    %v1653 = vpop.f32.mrf.mxu0
    %1654 = vdwg.mxu0
    %1655 = vmatpush.bf16.msra.mxu0 0
    %1656 = vmatpush.bf16.msra.mxu0 0
    %1657 = vmatpush.bf16.msra.mxu0 0
    %1658 = vmatpush.bf16.msra.mxu0 0
    %1659 = vmatpush.bf16.msra.mxu0 0
    %1660 = vmatpush.bf16.msra.mxu0 0
    %1661 = vmatpush.bf16.msra.mxu0 0
    %1662 = vmatpush.bf16.msra.mxu0 %v1509
    %1663 = vmatmul.bf16.gmra.mxu0 %v1614
    %v1664 = vpop.f32.mrf.mxu0
    %v1665 = vadd.f32 %v1652, %v1664
    %v1666 = vpop.f32.mrf.mxu0
    %1667 = vdwg.mxu0
    %1668 = vmatpush.bf16.msra.mxu0 %v1442
    %1669 = vmatpush.bf16.msra.mxu0 %v1438
    %1670 = vmatpush.bf16.msra.mxu0 %v1434
    %1671 = vmatpush.bf16.msra.mxu0 %v1430
    %1672 = vmatpush.bf16.msra.mxu0 %v1426
    %1673 = vmatpush.bf16.msra.mxu0 %v1422
    %1674 = vmatpush.bf16.msra.mxu0 %v1418
    %1675 = vmatpush.bf16.msra.mxu0 %v1414
    %1676 = vmatmul.bf16.gmra.mxu0 %v999
    %v1677 = vpop.f32.mrf.mxu0
    %v1678 = vadd.f32 %v1106, %v1677
    %v1679 = vpop.f32.mrf.mxu0
    %1680 = vdwg.mxu0
    %1681 = vmatpush.bf16.msra.mxu0 %v1474
    %1682 = vmatpush.bf16.msra.mxu0 %v1470
    %1683 = vmatpush.bf16.msra.mxu0 %v1466
    %1684 = vmatpush.bf16.msra.mxu0 %v1462
    %1685 = vmatpush.bf16.msra.mxu0 %v1458
    %1686 = vmatpush.bf16.msra.mxu0 %v1454
    %1687 = vmatpush.bf16.msra.mxu0 %v1450
    %1688 = vmatpush.bf16.msra.mxu0 %v1446
    %1689 = vmatmul.bf16.gmra.mxu0 %v1000
    %v1690 = vpop.f32.mrf.mxu0
    %v1691 = vadd.f32 %v1678, %v1690
    %v1692 = vpop.f32.mrf.mxu0
    %1693 = vdwg.mxu0
    %1694 = vmatpush.bf16.msra.mxu0 %v1506
    %1695 = vmatpush.bf16.msra.mxu0 %v1502
    %1696 = vmatpush.bf16.msra.mxu0 %v1498
    %1697 = vmatpush.bf16.msra.mxu0 %v1494
    %1698 = vmatpush.bf16.msra.mxu0 %v1490
    %1699 = vmatpush.bf16.msra.mxu0 %v1486
    %1700 = vmatpush.bf16.msra.mxu0 %v1482
    %1701 = vmatpush.bf16.msra.mxu0 %v1478
    %1702 = vmatmul.bf16.gmra.mxu0 %v1001
    %v1703 = vpop.f32.mrf.mxu0
    %v1704 = vadd.f32 %v1691, %v1703
    %v1705 = vpop.f32.mrf.mxu0
    %1706 = vdwg.mxu0
    %1707 = vmatpush.bf16.msra.mxu0 0
    %1708 = vmatpush.bf16.msra.mxu0 0
    %1709 = vmatpush.bf16.msra.mxu0 0
    %1710 = vmatpush.bf16.msra.mxu0 0
    %1711 = vmatpush.bf16.msra.mxu0 0
    %1712 = vmatpush.bf16.msra.mxu0 0
    %1713 = vmatpush.bf16.msra.mxu0 0
    %1714 = vmatpush.bf16.msra.mxu0 %v1510
    %1715 = vmatmul.bf16.gmra.mxu0 %v1614
    %v1716 = vpop.f32.mrf.mxu0
    %v1717 = vadd.f32 %v1704, %v1716
    %v1718 = vpop.f32.mrf.mxu0
    %1719 = vdwg.mxu0
    %1720 = vmatpush.bf16.msra.mxu0 %v1443
    %1721 = vmatpush.bf16.msra.mxu0 %v1439
    %1722 = vmatpush.bf16.msra.mxu0 %v1435
    %1723 = vmatpush.bf16.msra.mxu0 %v1431
    %1724 = vmatpush.bf16.msra.mxu0 %v1427
    %1725 = vmatpush.bf16.msra.mxu0 %v1423
    %1726 = vmatpush.bf16.msra.mxu0 %v1419
    %1727 = vmatpush.bf16.msra.mxu0 %v1415
    %1728 = vmatmul.bf16.gmra.mxu0 %v999
    %v1729 = vpop.f32.mrf.mxu0
    %v1730 = vadd.f32 %v1107, %v1729
    %v1731 = vpop.f32.mrf.mxu0
    %1732 = vdwg.mxu0
    %1733 = vmatpush.bf16.msra.mxu0 %v1475
    %1734 = vmatpush.bf16.msra.mxu0 %v1471
    %1735 = vmatpush.bf16.msra.mxu0 %v1467
    %1736 = vmatpush.bf16.msra.mxu0 %v1463
    %1737 = vmatpush.bf16.msra.mxu0 %v1459
    %1738 = vmatpush.bf16.msra.mxu0 %v1455
    %1739 = vmatpush.bf16.msra.mxu0 %v1451
    %1740 = vmatpush.bf16.msra.mxu0 %v1447
    %1741 = vmatmul.bf16.gmra.mxu0 %v1000
    %v1742 = vpop.f32.mrf.mxu0
    %v1743 = vadd.f32 %v1730, %v1742
    %v1744 = vpop.f32.mrf.mxu0
    %1745 = vdwg.mxu0
    %1746 = vmatpush.bf16.msra.mxu0 %v1507
    %1747 = vmatpush.bf16.msra.mxu0 %v1503
    %1748 = vmatpush.bf16.msra.mxu0 %v1499
    %1749 = vmatpush.bf16.msra.mxu0 %v1495
    %1750 = vmatpush.bf16.msra.mxu0 %v1491
    %1751 = vmatpush.bf16.msra.mxu0 %v1487
    %1752 = vmatpush.bf16.msra.mxu0 %v1483
    %1753 = vmatpush.bf16.msra.mxu0 %v1479
    %1754 = vmatmul.bf16.gmra.mxu0 %v1001
    %v1755 = vpop.f32.mrf.mxu0
    %v1756 = vadd.f32 %v1743, %v1755
    %v1757 = vpop.f32.mrf.mxu0
    %1758 = vdwg.mxu0
    %1759 = vmatpush.bf16.msra.mxu0 0
    %1760 = vmatpush.bf16.msra.mxu0 0
    %1761 = vmatpush.bf16.msra.mxu0 0
    %1762 = vmatpush.bf16.msra.mxu0 0
    %1763 = vmatpush.bf16.msra.mxu0 0
    %1764 = vmatpush.bf16.msra.mxu0 0
    %1765 = vmatpush.bf16.msra.mxu0 0
    %1766 = vmatpush.bf16.msra.mxu0 %v1511
    %1767 = vmatmul.bf16.gmra.mxu0 %v1614
    %v1768 = vpop.f32.mrf.mxu0
    %v1769 = vadd.f32 %v1756, %v1768
    %v1770 = vpop.f32.mrf.mxu0
    %1771 = vdwg.mxu0
    %1772 = vmatpush.bf16.msra.mxu0 %v1444
    %1773 = vmatpush.bf16.msra.mxu0 %v1440
    %1774 = vmatpush.bf16.msra.mxu0 %v1436
    %1775 = vmatpush.bf16.msra.mxu0 %v1432
    %1776 = vmatpush.bf16.msra.mxu0 %v1428
    %1777 = vmatpush.bf16.msra.mxu0 %v1424
    %1778 = vmatpush.bf16.msra.mxu0 %v1420
    %1779 = vmatpush.bf16.msra.mxu0 %v1416
    %1780 = vmatmul.bf16.gmra.mxu0 %v999
    %v1781 = vpop.f32.mrf.mxu0
    %v1782 = vadd.f32 %v1108, %v1781
    %v1783 = vpop.f32.mrf.mxu0
    %1784 = vdwg.mxu0
    %1785 = vmatpush.bf16.msra.mxu0 %v1476
    %1786 = vmatpush.bf16.msra.mxu0 %v1472
    %1787 = vmatpush.bf16.msra.mxu0 %v1468
    %1788 = vmatpush.bf16.msra.mxu0 %v1464
    %1789 = vmatpush.bf16.msra.mxu0 %v1460
    %1790 = vmatpush.bf16.msra.mxu0 %v1456
    %1791 = vmatpush.bf16.msra.mxu0 %v1452
    %1792 = vmatpush.bf16.msra.mxu0 %v1448
    %1793 = vmatmul.bf16.gmra.mxu0 %v1000
    %v1794 = vpop.f32.mrf.mxu0
    %v1795 = vadd.f32 %v1782, %v1794
    %v1796 = vpop.f32.mrf.mxu0
    %1797 = vdwg.mxu0
    %1798 = vmatpush.bf16.msra.mxu0 %v1508
    %1799 = vmatpush.bf16.msra.mxu0 %v1504
    %1800 = vmatpush.bf16.msra.mxu0 %v1500
    %1801 = vmatpush.bf16.msra.mxu0 %v1496
    %1802 = vmatpush.bf16.msra.mxu0 %v1492
    %1803 = vmatpush.bf16.msra.mxu0 %v1488
    %1804 = vmatpush.bf16.msra.mxu0 %v1484
    %1805 = vmatpush.bf16.msra.mxu0 %v1480
    %1806 = vmatmul.bf16.gmra.mxu0 %v1001
    %v1807 = vpop.f32.mrf.mxu0
    %v1808 = vadd.f32 %v1795, %v1807
    %v1809 = vpop.f32.mrf.mxu0
    %1810 = vdwg.mxu0
    %1811 = vmatpush.bf16.msra.mxu0 0
    %1812 = vmatpush.bf16.msra.mxu0 0
    %1813 = vmatpush.bf16.msra.mxu0 0
    %1814 = vmatpush.bf16.msra.mxu0 0
    %1815 = vmatpush.bf16.msra.mxu0 0
    %1816 = vmatpush.bf16.msra.mxu0 0
    %1817 = vmatpush.bf16.msra.mxu0 0
    %1818 = vmatpush.bf16.msra.mxu0 %v1512
    %1819 = vmatmul.bf16.gmra.mxu0 %v1614
    %v1820 = vpop.f32.mrf.mxu0
    %v1821 = vadd.f32 %v1808, %v1820
    %v1822 = vpop.f32.mrf.mxu0
    %1823 = vdwg.mxu0
    %v1824 = vmax.f32 %v1665, 0.0
    %v1825 = vmax.f32 %v1717, 0.0
    %v1826 = vmax.f32 %v1769, 0.0
    %v1827 = vmax.f32 %v1821, 0.0
    %v1828 = vpack.c.bf16 %v1824, %v1824
    %v1829 = vpack.c.bf16 %v1825, %v1825
    %v1830 = vpack.c.bf16 %v1826, %v1826
    %v1831 = vpack.c.bf16 %v1827, %v1827
    %v1832 = vld [vmem:[#allocation10] sm:$0xf]
    %v1833 = vld [vmem:[#allocation10 + $0x4] sm:$0xf]
    %v1834 = vld [vmem:[#allocation10 + $0x8] sm:$0xf]
    %v1835 = vld [vmem:[#allocation10 + $0xc] sm:$0xf]
    %v1836 = vld [vmem:[#allocation10 + $0x10] sm:$0xf]
    %v1837 = vld [vmem:[#allocation10 + $0x14] sm:$0xf]
    %v1838 = vld [vmem:[#allocation10 + $0x18] sm:$0xf]
    %v1839 = vld [vmem:[#allocation10 + $0x1c] sm:$0xf]
    %v1840 = vld [vmem:[#allocation10 + $0x20] sm:$0xf]
    %v1841 = vld [vmem:[#allocation10 + $0x24] sm:$0xf]
    %v1842 = vld [vmem:[#allocation10 + $0x28] sm:$0xf]
    %v1843 = vld [vmem:[#allocation10 + $0x2c] sm:$0xf]
    %v1844 = vld [vmem:[#allocation10 + $0x30] sm:$0xf]
    %v1845 = vld [vmem:[#allocation10 + $0x34] sm:$0xf]
    %v1846 = vld [vmem:[#allocation10 + $0x38] sm:$0xf]
    %v1847 = vld [vmem:[#allocation10 + $0x3c] sm:$0xf]
    %v1848 = vld [vmem:[#allocation10 + $0x40] sm:$0xf]
    %v1849 = vld [vmem:[#allocation10 + $0x44] sm:$0xf]
    %v1850 = vld [vmem:[#allocation10 + $0x48] sm:$0xf]
    %v1851 = vld [vmem:[#allocation10 + $0x4c] sm:$0xf]
    %v1852 = vld [vmem:[#allocation10 + $0x50] sm:$0xf]
    %v1853 = vld [vmem:[#allocation10 + $0x54] sm:$0xf]
    %v1854 = vld [vmem:[#allocation10 + $0x58] sm:$0xf]
    %v1855 = vld [vmem:[#allocation10 + $0x5c] sm:$0xf]
    %v1856 = vld [vmem:[#allocation10 + $0x60] sm:$0xf]
    %v1857 = vld [vmem:[#allocation10 + $0x64] sm:$0xf]
    %v1858 = vld [vmem:[#allocation10 + $0x68] sm:$0xf]
    %v1859 = vld [vmem:[#allocation10 + $0x6c] sm:$0xf]
    %v1860 = vld [vmem:[#allocation10 + $0x70] sm:$0xf]
    %v1861 = vld [vmem:[#allocation10 + $0x74] sm:$0xf]
    %v1862 = vld [vmem:[#allocation10 + $0x78] sm:$0xf]
    %v1863 = vld [vmem:[#allocation10 + $0x7c] sm:$0xf]
    %v1864 = vld [vmem:[#allocation10 + $0x80] sm:$0xf]
    %v1865 = vld [vmem:[#allocation10 + $0x84] sm:$0xf]
    %v1866 = vld [vmem:[#allocation10 + $0x88] sm:$0xf]
    %v1867 = vld [vmem:[#allocation10 + $0x8c] sm:$0xf]
    %v1868 = vld [vmem:[#allocation10 + $0x90] sm:$0xf]
    %v1869 = vld [vmem:[#allocation10 + $0x94] sm:$0xf]
    %v1870 = vld [vmem:[#allocation10 + $0x98] sm:$0xf]
    %v1871 = vld [vmem:[#allocation10 + $0x9c] sm:$0xf]
    %v1872 = vld [vmem:[#allocation10 + $0xa0] sm:$0xf]
    %v1873 = vld [vmem:[#allocation10 + $0xa4] sm:$0xf]
    %v1874 = vld [vmem:[#allocation10 + $0xa8] sm:$0xf]
    %v1875 = vld [vmem:[#allocation10 + $0xac] sm:$0xf]
    %v1876 = vld [vmem:[#allocation10 + $0xb0] sm:$0xf]
    %v1877 = vld [vmem:[#allocation10 + $0xb4] sm:$0xf]
    %v1878 = vld [vmem:[#allocation10 + $0xb8] sm:$0xf]
    %v1879 = vld [vmem:[#allocation10 + $0xbc] sm:$0xf]
    %v1880 = vld [vmem:[#allocation10 + $0xc0] sm:$0xf]
    %v1881 = vld [vmem:[#allocation10 + $0xc4] sm:$0xf]
    %v1882 = vld [vmem:[%s8] sm:$0x1]
    %v1884 = vperm.slane %v1882, 0
    %v1936 = vunpack.c.l.b16 %v1832
    %v1937 = vunpack.c.l.b16 %v1833
    %v1938 = vunpack.c.l.b16 %v1834
    %v1939 = vunpack.c.l.b16 %v1835
    %v1940 = vunpack.c.l.b16 %v1836
    %v1941 = vunpack.c.l.b16 %v1837
    %v1942 = vunpack.c.l.b16 %v1838
    %v1943 = vunpack.c.l.b16 %v1839
    %v1944 = vunpack.c.l.b16 %v1840
    %v1945 = vunpack.c.l.b16 %v1841
    %v1946 = vunpack.c.l.b16 %v1842
    %v1947 = vunpack.c.l.b16 %v1843
    %v1948 = vunpack.c.l.b16 %v1844
    %v1949 = vunpack.c.l.b16 %v1845
    %v1950 = vunpack.c.l.b16 %v1846
    %v1951 = vunpack.c.l.b16 %v1847
    %v1952 = vunpack.c.l.b16 %v1848
    %v1953 = vunpack.c.l.b16 %v1849
    %v1954 = vunpack.c.l.b16 %v1850
    %v1955 = vunpack.c.l.b16 %v1851
    %v1956 = vunpack.c.l.b16 %v1852
    %v1957 = vunpack.c.l.b16 %v1853
    %v1958 = vunpack.c.l.b16 %v1854
    %v1959 = vunpack.c.l.b16 %v1855
    %v1960 = vunpack.c.l.b16 %v1856
    %v1961 = vunpack.c.l.b16 %v1857
    %v1962 = vunpack.c.l.b16 %v1858
    %v1963 = vunpack.c.l.b16 %v1859
    %v1964 = vunpack.c.l.b16 %v1860
    %v1965 = vunpack.c.l.b16 %v1861
    %v1966 = vunpack.c.l.b16 %v1862
    %v1967 = vunpack.c.l.b16 %v1863
    %v1968 = vunpack.c.l.b16 %v1864
    %v1969 = vunpack.c.l.b16 %v1865
    %v1970 = vunpack.c.l.b16 %v1866
    %v1971 = vunpack.c.l.b16 %v1867
    %v1972 = vunpack.c.l.b16 %v1868
    %v1973 = vunpack.c.l.b16 %v1869
    %v1974 = vunpack.c.l.b16 %v1870
    %v1975 = vunpack.c.l.b16 %v1871
    %v1976 = vunpack.c.l.b16 %v1872
    %v1977 = vunpack.c.l.b16 %v1873
    %v1978 = vunpack.c.l.b16 %v1874
    %v1979 = vunpack.c.l.b16 %v1875
    %v1980 = vunpack.c.l.b16 %v1876
    %v1981 = vunpack.c.l.b16 %v1877
    %v1982 = vunpack.c.l.b16 %v1878
    %v1983 = vunpack.c.l.b16 %v1879
    %v1984 = vunpack.c.l.b16 %v1880
    %v1985 = vunpack.c.l.b16 %v1881
    %v1986 = vpack.c.b16 %v1937, %v1936
    %v1987 = vpack.c.b16 %v1939, %v1938
    %v1988 = vpack.c.b16 %v1941, %v1940
    %v1989 = vpack.c.b16 %v1943, %v1942
    %v1990 = vpack.c.b16 %v1945, %v1944
    %v1991 = vpack.c.b16 %v1947, %v1946
    %v1992 = vpack.c.b16 %v1949, %v1948
    %v1993 = vpack.c.b16 %v1951, %v1950
    %v1994 = vpack.c.b16 %v1953, %v1952
    %v1995 = vpack.c.b16 %v1955, %v1954
    %v1996 = vpack.c.b16 %v1957, %v1956
    %v1997 = vpack.c.b16 %v1959, %v1958
    %v1998 = vpack.c.b16 %v1961, %v1960
    %v1999 = vpack.c.b16 %v1963, %v1962
    %v2000 = vpack.c.b16 %v1965, %v1964
    %v2001 = vpack.c.b16 %v1967, %v1966
    %v2002 = vpack.c.b16 %v1969, %v1968
    %v2003 = vpack.c.b16 %v1971, %v1970
    %v2004 = vpack.c.b16 %v1973, %v1972
    %v2005 = vpack.c.b16 %v1975, %v1974
    %v2006 = vpack.c.b16 %v1977, %v1976
    %v2007 = vpack.c.b16 %v1979, %v1978
    %v2008 = vpack.c.b16 %v1981, %v1980
    %v2009 = vpack.c.b16 %v1983, %v1982
    %v2010 = vpack.c.b16 %v1985, %v1984
    %v2037 = vsel %vm783, %v1831, 0
    %2039 = vmatpush.bf16.msra.mxu0 %v1993
    %2040 = vmatpush.bf16.msra.mxu0 %v1992
    %2041 = vmatpush.bf16.msra.mxu0 %v1991
    %2042 = vmatpush.bf16.msra.mxu0 %v1990
    %2043 = vmatpush.bf16.msra.mxu0 %v1989
    %2044 = vmatpush.bf16.msra.mxu0 %v1988
    %2045 = vmatpush.bf16.msra.mxu0 %v1987
    %2046 = vmatpush.bf16.msra.mxu0 %v1986
    %2047 = vmatmul.bf16.gmra.mxu0 %v1828
    %v2048 = vpop.f32.mrf.mxu0
    %v2049 = vadd.f32 %v1884, %v2048
    %v2050 = vpop.f32.mrf.mxu0
    %2051 = vdwg.mxu0
    %2052 = vmatpush.bf16.msra.mxu0 %v2001
    %2053 = vmatpush.bf16.msra.mxu0 %v2000
    %2054 = vmatpush.bf16.msra.mxu0 %v1999
    %2055 = vmatpush.bf16.msra.mxu0 %v1998
    %2056 = vmatpush.bf16.msra.mxu0 %v1997
    %2057 = vmatpush.bf16.msra.mxu0 %v1996
    %2058 = vmatpush.bf16.msra.mxu0 %v1995
    %2059 = vmatpush.bf16.msra.mxu0 %v1994
    %2060 = vmatmul.bf16.gmra.mxu0 %v1829
    %v2061 = vpop.f32.mrf.mxu0
    %v2062 = vadd.f32 %v2049, %v2061
    %v2063 = vpop.f32.mrf.mxu0
    %2064 = vdwg.mxu0
    %2065 = vmatpush.bf16.msra.mxu0 %v2009
    %2066 = vmatpush.bf16.msra.mxu0 %v2008
    %2067 = vmatpush.bf16.msra.mxu0 %v2007
    %2068 = vmatpush.bf16.msra.mxu0 %v2006
    %2069 = vmatpush.bf16.msra.mxu0 %v2005
    %2070 = vmatpush.bf16.msra.mxu0 %v2004
    %2071 = vmatpush.bf16.msra.mxu0 %v2003
    %2072 = vmatpush.bf16.msra.mxu0 %v2002
    %2073 = vmatmul.bf16.gmra.mxu0 %v1830
    %v2074 = vpop.f32.mrf.mxu0
    %v2075 = vadd.f32 %v2062, %v2074
    %v2076 = vpop.f32.mrf.mxu0
    %2077 = vdwg.mxu0
    %2078 = vmatpush.bf16.msra.mxu0 0
    %2079 = vmatpush.bf16.msra.mxu0 0
    %2080 = vmatpush.bf16.msra.mxu0 0
    %2081 = vmatpush.bf16.msra.mxu0 0
    %2082 = vmatpush.bf16.msra.mxu0 0
    %2083 = vmatpush.bf16.msra.mxu0 0
    %2084 = vmatpush.bf16.msra.mxu0 0
    %2085 = vmatpush.bf16.msra.mxu0 %v2010
    %2086 = vmatmul.bf16.gmra.mxu0 %v2037
    %v2087 = vpop.f32.mrf.mxu0
    %v2088 = vadd.f32 %v2075, %v2087
    %v2089 = vpop.f32.mrf.mxu0
    %2090 = vdwg.mxu0
    %v2091 = vxor.u32 %v2088, 2147483648
    %v2092 = vmul.f32 %v2091, 1.442695
    %v2093 = vpow.pop %v2092
    %v2094 = vadd.f32 %v2093, 1.0
    %v2095 = vrcp.pop %v2094
    %v2096 = vmul.f32 %v2094, %v2095
    %v2097 = vsub.f32 1.0, %v2096
    %v2098 = vmul.f32 %v2095, %v2097
    %v2099 = vadd.f32 %v2095, %v2098
    %vm2100 = vweird.f32 %v2094
    %vm2101 = vweird.f32 %v2095
    %vm2102 = vmor %vm2100, %vm2101
    %v2103 = vsel %vm2102, %v2095, %v2099
    %v2104 = vand.u32 2147483647, %v2094
    %vm2105 = vcmp.eq.f32.partialorder %v2104, 8.507059e+37
    %v2106 = vand.u32 %v2094, 2147483648
    %v2107 = vor.u32 1.1754944e-38, %v2106
    %v2108 = vsel %vm2105, %v2107, %v2103
    %v2109 = vmul.f32 1.0, %v2108
    %2110 = vst [vmem:[#allocation11] sm:$0xff] %v2109
    // Predicated region
    $region58: #{tpu_custom_call.1} parent=1 // pred_check
      _
    $region59: #{tpu_custom_call.1} parent=1 // pred_check_branch
      %2112 = sbr.rel (0) target = $region61
    $region60: #{tpu_custom_call.1} parent=1 // pred_region
      %2114 = vsyncadd [#allocation4], 0
      %s2116 = sshll.u32 [#allocation11], 4
      %s2117 = int_to_ptr.vmem [resolvable:$true] %s2116
      %s2118 = sshll.u32 %s9, 4
      %s2119 = int_to_ptr.hbm [resolvable:$true] %s2118
      %2121 = dma.vmem_to_hbm [thread:$0]  %s2117, 128, %s2119, [#allocation4]
    $region61: #{tpu_custom_call.1} parent=1 // pred_fallthru
      _
    // Predicated region
    $region62: #{tpu_custom_call.1} parent=1 // pred_check
      _
    $region63: #{tpu_custom_call.1} parent=1 // pred_check_branch
      %2123 = sbr.rel (0) target = $region65
    $region64: #{tpu_custom_call.1} parent=1 // pred_region
      %2125 = dma.done [#allocation4], 128
    $region65: #{tpu_custom_call.1} parent=1 // pred_fallthru
      _
    %2126 = vsyncpa [#allocation3], 1
    %2127 = vsyncpa [#allocation6], 1
    %2128 = vsyncpa [#allocation9], 1
    %2129 = vsyncpa [#allocation4], 1

</llo_original>
